<compile_context>
chip_gen: v7x
topology: tpu7x:2x2x1
jax: 0.10.0
libtpu: 0.0.40
codegen_flags: <defaults>
</compile_context>

<pallas_src>
import jax
import jax.numpy as jnp
from jax.experimental import pallas as pl
from jax.experimental.pallas import tpu as pltpu

LATENT_DIMS = 2
HIDDEN = 512
OUT = 784          # 28*28


def _round_up(x, m):
    return (x + m - 1) // m * m


def _cdiv(a, b):
    return (a + b - 1) // b


def decoder_kernel(z_ref, w1_ref, b1_ref, w2_ref, b2_ref, o_ref):
    z = z_ref[...]                      # (TB, 2)   f32
    w1 = w1_ref[...]                    # (2, 512)  f32

    # Layer 1: K=2 contraction as two VPU broadcast-FMAs (no MXU pass for K=2).
    h = z[:, 0:1] * w1[0:1, :] + z[:, 1:2] * w1[1:2, :] + b1_ref[...]
    h = jnp.maximum(h, 0.0)             # (TB, 512) f32

    # Layer 2: MXU matmul, bf16 operands, f32 accumulation.  N=784 -> Mosaic pads
    # to 7x128 internally; the store below is lane-dense except one masked vreg.
    y = jnp.dot(h.astype(jnp.bfloat16), w2_ref[...],
                preferred_element_type=jnp.float32)
    y = y + b2_ref[...]                 # (TB, 784) f32
    o_ref[...] = jax.nn.sigmoid(y).astype(o_ref.dtype)


def decoder_forward(z, w1_t, b1, w2_t, b2, *, tb=1024, out_dtype=jnp.float32):
    """z: (B, 2) f32.  w1_t: (2,512) f32, b1: (1,512) f32,
    w2_t: (512,784) bf16, b2: (1,784) f32.
    Returns (B, 1, 28, 28) array of `out_dtype` (f32 default, bf16 for v6e/v7x
    writeback-bound deployments)."""
    B = z.shape[0]

    # --- batch tiling ---------------------------------------------------------
    B8 = _round_up(B, 8)                      # sublane-granular padding only
    n_steps = _cdiv(B8, tb)                   # enough steps to keep TB <= tb
    if B8 >= 16:                              # >=2 steps so both v7x TCs get work
        n_steps = max(n_steps, 2)
    TB = _round_up(_cdiv(B8, n_steps), 8)     # per-step tile, multiple of 8
    B_pad = n_steps * TB
    if B_pad != B:
        z = jnp.pad(z, ((0, B_pad - B), (0, 0)))
    grid = (n_steps,)

    cost = pl.CostEstimate(
        flops=2 * B_pad * HIDDEN * OUT + 5 * B_pad * HIDDEN + B_pad * OUT,
        transcendentals=B_pad * OUT,
        bytes_accessed=(B_pad * LATENT_DIMS * 4          # z
                        + w1_t.size * 4 + b1.size * 4    # layer-1 params
                        + w2_t.size * 2 + b2.size * 4    # layer-2 params (w2 bf16)
                        + B_pad * OUT * jnp.dtype(out_dtype).itemsize),
    )

    out = pl.pallas_call(
        decoder_kernel,
        out_shape=jax.ShapeDtypeStruct((B_pad, OUT), out_dtype),
        grid=grid,
        in_specs=[
            # z streams per batch tile.
            pl.BlockSpec((TB, LATENT_DIMS), lambda i: (i, 0)),
            # Weights / biases: constant index_map -> VMEM-resident, DMA'd once.
            pl.BlockSpec((LATENT_DIMS, HIDDEN), lambda i: (0, 0)),
            pl.BlockSpec((1, HIDDEN), lambda i: (0, 0)),
            pl.BlockSpec((HIDDEN, OUT), lambda i: (0, 0)),
            pl.BlockSpec((1, OUT), lambda i: (0, 0)),
        ],
        out_specs=pl.BlockSpec((TB, OUT), lambda i: (i, 0)),
        compiler_params=pltpu.CompilerParams(
            dimension_semantics=("parallel",),
            vmem_limit_bytes=32 * 1024 * 1024,
        ),
        cost_estimate=cost,
    )(z, w1_t, b1, w2_t, b2)

    # Only the (<=8*n_steps-row) batch padding is sliced off; no lane slicing.
    return out[:B].reshape(-1, 1, 28, 28)


def init_params(key):
    """Deterministic init matching nn.Linear shapes (PyTorch-default uniform)."""
    k1, k2, k3, k4 = jax.random.split(key, 4)
    bound1 = 1.0 / jnp.sqrt(LATENT_DIMS)
    w1 = jax.random.uniform(k1, (HIDDEN, LATENT_DIMS), jnp.float32, -bound1, bound1)
    b1 = jax.random.uniform(k2, (HIDDEN,), jnp.float32, -bound1, bound1)
    bound2 = 1.0 / jnp.sqrt(HIDDEN)
    w2 = jax.random.uniform(k3, (OUT, HIDDEN), jnp.float32, -bound2, bound2)
    b2 = jax.random.uniform(k4, (OUT,), jnp.float32, -bound2, bound2)
    return w1, b1, w2, b2


def prepare_params(w1, b1, w2, b2):
    """PyTorch-layout params -> kernel layout: transpose to (in, out); w2 in bf16."""
    w1_t = w1.T                                   # (2, 512)   f32
    b1r = b1.reshape(1, HIDDEN)                   # (1, 512)   f32
    w2_t = w2.T.astype(jnp.bfloat16)              # (512, 784) bf16
    b2r = b2.reshape(1, OUT)                      # (1, 784)   f32
    return w1_t, b1r, w2_t, b2r


def reference_forward(z, w1, b1, w2, b2):
    h = jnp.maximum(z @ w1.T + b1, 0.0)
    y = jax.nn.sigmoid(h @ w2.T + b2)
    return y.reshape(-1, 1, 28, 28)


if __name__ == "__main__":
    key = jax.random.PRNGKey(0)
    kz, kz2, kp = jax.random.split(key, 3)

    w1, b1, w2, b2 = init_params(kp)
    kern_params = prepare_params(w1, b1, w2, b2)

    # Case 1: small batch, single grid step, f32 output (module-faithful path).
    B = 8
    z = jax.random.normal(kz, (B, LATENT_DIMS), dtype=jnp.float32)
    out = jax.block_until_ready(decoder_forward(z, *kern_params))
    ref = reference_forward(z, w1, b1, w2, b2)
    assert out.shape == (B, 1, 28, 28), out.shape
    # bf16 weights/activation on the 512-wide contraction -> loosened tolerance.
    assert jnp.allclose(out, ref, atol=1e-2, rtol=1e-2), "mismatch vs JAX ref (B=8)"

    # Case 2: ragged batch exercising the tiled/pipelined multi-step grid path
    # (tb=8 -> TB=8, 3 grid steps, 4 padded rows sliced off).
    B2 = 20
    z2 = jax.random.normal(kz2, (B2, LATENT_DIMS), dtype=jnp.float32)
    out2 = jax.block_until_ready(decoder_forward(z2, *kern_params, tb=8))
    ref2 = reference_forward(z2, w1, b1, w2, b2)
    assert out2.shape == (B2, 1, 28, 28), out2.shape
    assert jnp.allclose(out2, ref2, atol=1e-2, rtol=1e-2), "mismatch vs JAX ref (B=20)"

    # Case 3: bf16-output path (v6e/v7x writeback-bound option).
    out3 = jax.block_until_ready(
        decoder_forward(z, *kern_params, out_dtype=jnp.bfloat16))
    assert out3.dtype == jnp.bfloat16
    assert jnp.allclose(out3.astype(jnp.float32), ref, atol=2e-2, rtol=2e-2), \
        "mismatch vs JAX ref (bf16 out)"

    print("KERNEL_OK")
</pallas_src>

<mosaic_0001>
module attributes {stable_mosaic.version = 11 : i64} {
  func.func @decoder_kernel(%arg0: i32, %arg1: memref<8x2xf32, #tpu.memory_space<vmem>>, %arg2: memref<2x512xf32, #tpu.memory_space<vmem>>, %arg3: memref<1x512xf32, #tpu.memory_space<vmem>>, %arg4: memref<512x784xbf16, #tpu.memory_space<vmem>>, %arg5: memref<1x784xf32, #tpu.memory_space<vmem>>, %arg6: memref<8x784xf32, #tpu.memory_space<vmem>>) attributes {dimension_semantics = [#tpu.dimension_semantics<parallel>], iteration_bounds = array<i64: 1>, scalar_prefetch = 0 : i64, scratch_operands = 0 : i64, tpu.core_type = #tpu.core_type<tc>, window_params = [{transform_indices = @transform_0, window_bounds = array<i64: 8, 2>}, {pipeline_mode = #tpu.pipeline_mode<synchronous>, transform_indices = @transform_1, window_bounds = array<i64: 2, 512>}, {pipeline_mode = #tpu.pipeline_mode<synchronous>, transform_indices = @transform_2, window_bounds = array<i64: 1, 512>}, {pipeline_mode = #tpu.pipeline_mode<synchronous>, transform_indices = @transform_3, window_bounds = array<i64: 512, 784>}, {pipeline_mode = #tpu.pipeline_mode<synchronous>, transform_indices = @transform_4, window_bounds = array<i64: 1, 784>}, {transform_indices = @transform_5, window_bounds = array<i64: 8, 784>}]} {
    %c0 = arith.constant 0 : index
    %c0_0 = arith.constant 0 : index
    %0 = vector.load %arg1[%c0, %c0_0] : memref<8x2xf32, #tpu.memory_space<vmem>>, vector<8x2xf32>
    %c0_1 = arith.constant 0 : index
    %c0_2 = arith.constant 0 : index
    %1 = vector.load %arg2[%c0_1, %c0_2] : memref<2x512xf32, #tpu.memory_space<vmem>>, vector<2x512xf32>
    %2 = vector.extract_strided_slice %0 {offsets = [0, 0], sizes = [8, 1], strides = [1, 1]} : vector<8x2xf32> to vector<8x1xf32>
    %3 = vector.extract_strided_slice %1 {offsets = [0, 0], sizes = [1, 512], strides = [1, 1]} : vector<2x512xf32> to vector<1x512xf32>
    %4 = vector.broadcast %2 : vector<8x1xf32> to vector<8x512xf32>
    %5 = vector.broadcast %3 : vector<1x512xf32> to vector<8x512xf32>
    %6 = arith.mulf %4, %5 : vector<8x512xf32>
    %7 = vector.extract_strided_slice %0 {offsets = [0, 1], sizes = [8, 1], strides = [1, 1]} : vector<8x2xf32> to vector<8x1xf32>
    %8 = vector.extract_strided_slice %1 {offsets = [1, 0], sizes = [1, 512], strides = [1, 1]} : vector<2x512xf32> to vector<1x512xf32>
    %9 = vector.broadcast %7 : vector<8x1xf32> to vector<8x512xf32>
    %10 = vector.broadcast %8 : vector<1x512xf32> to vector<8x512xf32>
    %11 = arith.mulf %9, %10 : vector<8x512xf32>
    %12 = arith.addf %6, %11 : vector<8x512xf32>
    %c0_3 = arith.constant 0 : index
    %c0_4 = arith.constant 0 : index
    %13 = vector.load %arg3[%c0_3, %c0_4] : memref<1x512xf32, #tpu.memory_space<vmem>>, vector<1x512xf32>
    %14 = vector.broadcast %13 : vector<1x512xf32> to vector<8x512xf32>
    %15 = arith.addf %12, %14 : vector<8x512xf32>
    %cst = arith.constant 0.000000e+00 : f32
    %16 = vector.broadcast %cst : f32 to vector<8x512xf32>
    %17 = arith.maximumf %15, %16 : vector<8x512xf32>
    %18 = arith.truncf %17 : vector<8x512xf32> to vector<8x512xbf16>
    %c0_5 = arith.constant 0 : index
    %c0_6 = arith.constant 0 : index
    %19 = vector.load %arg4[%c0_5, %c0_6] : memref<512x784xbf16, #tpu.memory_space<vmem>>, vector<512x784xbf16>
    %cst_7 = arith.constant dense<0.000000e+00> : vector<8x784xf32>
    %20 = tpu.matmul %18, %19, %cst_7 {dimension_numbers = #tpu.dot_dimension_numbers<[1], [0], [0], [1], [0, 0, 1, 1], [], []>} : vector<8x512xbf16>, vector<512x784xbf16>, vector<8x784xf32> -> vector<8x784xf32>
    %c0_8 = arith.constant 0 : index
    %c0_9 = arith.constant 0 : index
    %21 = vector.load %arg5[%c0_8, %c0_9] : memref<1x784xf32, #tpu.memory_space<vmem>>, vector<1x784xf32>
    %22 = vector.broadcast %21 : vector<1x784xf32> to vector<8x784xf32>
    %23 = arith.addf %20, %22 : vector<8x784xf32>
    %24 = arith.negf %23 : vector<8x784xf32>
    %25 = math.exp %24 : vector<8x784xf32>
    %cst_10 = arith.constant 1.000000e+00 : f32
    %26 = vector.broadcast %cst_10 : f32 to vector<8x784xf32>
    %27 = arith.addf %26, %25 : vector<8x784xf32>
    %28 = arith.divf %26, %27 : vector<8x784xf32>
    %c0_11 = arith.constant 0 : index
    %c0_12 = arith.constant 0 : index
    %29 = vector.load %arg6[%c0_11, %c0_12] : memref<8x784xf32, #tpu.memory_space<vmem>>, vector<8x784xf32>
    tpu.vector_store %arg6[%c0_11, %c0_12], %28 {strides = array<i32>} : memref<8x784xf32, #tpu.memory_space<vmem>>, vector<8x784xf32>,
    return
  }
  func.func @transform_0(%arg0: i32) -> (i32, i32) {
    %c0_i32 = arith.constant 0 : i32
    %c0_i32_0 = arith.constant 0 : i32
    return %arg0, %c0_i32 : i32, i32
  }
  func.func @transform_1(%arg0: i32) -> (i32, i32) {
    %c0_i32 = arith.constant 0 : i32
    %c0_i32_0 = arith.constant 0 : i32
    %c0_i32_1 = arith.constant 0 : i32
    return %c0_i32, %c0_i32_0 : i32, i32
  }
  func.func @transform_2(%arg0: i32) -> (i32, i32) {
    %c0_i32 = arith.constant 0 : i32
    %c0_i32_0 = arith.constant 0 : i32
    %c0_i32_1 = arith.constant 0 : i32
    return %c0_i32, %c0_i32_0 : i32, i32
  }
  func.func @transform_3(%arg0: i32) -> (i32, i32) {
    %c0_i32 = arith.constant 0 : i32
    %c0_i32_0 = arith.constant 0 : i32
    %c0_i32_1 = arith.constant 0 : i32
    return %c0_i32, %c0_i32_0 : i32, i32
  }
  func.func @transform_4(%arg0: i32) -> (i32, i32) {
    %c0_i32 = arith.constant 0 : i32
    %c0_i32_0 = arith.constant 0 : i32
    %c0_i32_1 = arith.constant 0 : i32
    return %c0_i32, %c0_i32_0 : i32, i32
  }
  func.func @transform_5(%arg0: i32) -> (i32, i32) {
    %c0_i32 = arith.constant 0 : i32
    %c0_i32_0 = arith.constant 0 : i32
    return %arg0, %c0_i32 : i32, i32
  }
}

</mosaic_0001>

<llo_original>
// kernel: tpu_custom_call.1
$region0: #{tpu_custom_call.1}
  #allocation0 [shape = 'u32[]', space=smem, size = 0x4, offset = 0x4, fixed_abs, tag = 'smem constant byte address 0x4 - core index']
  #allocation1 [shape = 'u32[144,128]{1,0:T(1,128)}', space=vmem, size = 0x12000, scoped, tag = 'internal scratch']
  %s0 = inlined_call_operand.vmem [shape: f32[8,2], index: 0, kind: input, shape index: {}]
  %s1 = inlined_call_operand.vmem [shape: f32[2,512], index: 1, kind: input, shape index: {}]
  %s2 = inlined_call_operand.vmem [shape: f32[1,512], index: 2, kind: input, shape index: {}]
  %s3 = inlined_call_operand.vmem [shape: bf16[512,784], index: 3, kind: input, shape index: {}]
  %s4 = inlined_call_operand.vmem [shape: f32[1,784], index: 4, kind: input, shape index: {}]
  %s5 = inlined_call_operand.hbm [shape: f32[8,784], index: 5, kind: output, shape index: {}]
  %s6 = sld [smem:[#allocation0]]
  $region30: #{tpu_custom_call.1} parent=0
    _
  %s8 = ssub.s32 1, %s6
  %s9 = scalar_select 0, %s8, %s6
  $region1: #{tpu_custom_call.1} parent=0
    #allocation2 [shape = 'u8[28672]{0}', space=vmem, size = 0x7000, scoped, tag = 'output window, operand 0, single buffered']
    #allocation3 [shape = 's32[1]{0}', space=sflag, size = 0x4, scoped, tag = 'scoped memory for tpu_custom_call.1']
    %10 = vsyncpa [#allocation3], 0
    // Predicated region
    $region2: #{tpu_custom_call.1} parent=1 // pred_check
      _
    $region3: #{tpu_custom_call.1} parent=1 // pred_check_branch
      %12 = sbr.rel (0) target = $region5
    $region4: #{tpu_custom_call.1} parent=1 // pred_region
      _
    $region5: #{tpu_custom_call.1} parent=1 // pred_fallthru
      _
    // Predicated region
    $region6: #{tpu_custom_call.1} parent=1 // pred_check
      _
    $region7: #{tpu_custom_call.1} parent=1 // pred_check_branch
      %14 = sbr.rel (0) target = $region9
    $region8: #{tpu_custom_call.1} parent=1 // pred_region
      _
    $region9: #{tpu_custom_call.1} parent=1 // pred_fallthru
      _
    // Predicated region
    $region10: #{tpu_custom_call.1} parent=1 // pred_check
      _
    $region11: #{tpu_custom_call.1} parent=1 // pred_check_branch
      %16 = sbr.rel (0) target = $region13
    $region12: #{tpu_custom_call.1} parent=1 // pred_region
      _
    $region13: #{tpu_custom_call.1} parent=1 // pred_fallthru
      _
    // Predicated region
    $region14: #{tpu_custom_call.1} parent=1 // pred_check
      _
    $region15: #{tpu_custom_call.1} parent=1 // pred_check_branch
      %18 = sbr.rel (0) target = $region17
    $region16: #{tpu_custom_call.1} parent=1 // pred_region
      _
    $region17: #{tpu_custom_call.1} parent=1 // pred_fallthru
      _
    // Predicated region
    $region18: #{tpu_custom_call.1} parent=1 // pred_check
      _
    $region19: #{tpu_custom_call.1} parent=1 // pred_check_branch
      %20 = sbr.rel (0) target = $region21
    $region20: #{tpu_custom_call.1} parent=1 // pred_region
      _
    $region21: #{tpu_custom_call.1} parent=1 // pred_fallthru
      _
    %v22 = vld [vmem:[%s0] sm:$0xff]
    %v23 = vld [vmem:[%s1] sm:$0xff]
    %25 = vset.pattern.permute.xlu0 0
    %26 = vperm.xlu0 %25, %v22
    %v27 = vpop.permute.xlu0 %26
    %v30 = vlaneseq
    %v31 = vshrl.u32 %v30, 7
    %v32 = vsub.s32 0, %v31
    %v33 = vrot.slane %v23, %v32
    %v34 = vlaneseq
    %v35 = vshrl.u32 %v34, 7
    %v36 = vsub.s32 2, %v35
    %v37 = vrot.slane %v23, %v36
    %v38 = vlaneseq
    %v39 = vshrl.u32 %v38, 7
    %v40 = vsub.s32 4, %v39
    %v41 = vrot.slane %v23, %v40
    %v42 = vlaneseq
    %v43 = vshrl.u32 %v42, 7
    %v44 = vsub.s32 6, %v43
    %v45 = vrot.slane %v23, %v44
    %v50 = vlaneseq
    %v51 = vshrl.u32 %v50, 7
    %v52 = vsub.s32 0, %v51
    %v53 = vrot.slane %v33, %v52
    %v54 = vlaneseq
    %v55 = vshrl.u32 %v54, 7
    %v56 = vsub.s32 0, %v55
    %v57 = vrot.slane %v37, %v56
    %v58 = vlaneseq
    %v59 = vshrl.u32 %v58, 7
    %v60 = vsub.s32 0, %v59
    %v61 = vrot.slane %v41, %v60
    %v62 = vlaneseq
    %v63 = vshrl.u32 %v62, 7
    %v64 = vsub.s32 0, %v63
    %v65 = vrot.slane %v45, %v64
    %v66 = vmul.f32 %v27, %v53
    %v67 = vmul.f32 %v27, %v57
    %v68 = vmul.f32 %v27, %v61
    %v69 = vmul.f32 %v27, %v65
    %70 = vset.pattern.permute.xlu0 1
    %71 = vperm.xlu0 %70, %v22
    %v72 = vpop.permute.xlu0 %71
    %v74 = vlaneseq
    %v75 = vshrl.u32 %v74, 7
    %v76 = vsub.s32 1, %v75
    %v77 = vrot.slane %v23, %v76
    %v78 = vlaneseq
    %v79 = vshrl.u32 %v78, 7
    %v80 = vsub.s32 3, %v79
    %v81 = vrot.slane %v23, %v80
    %v82 = vlaneseq
    %v83 = vshrl.u32 %v82, 7
    %v84 = vsub.s32 5, %v83
    %v85 = vrot.slane %v23, %v84
    %v86 = vlaneseq
    %v87 = vshrl.u32 %v86, 7
    %v88 = vsub.s32 7, %v87
    %v89 = vrot.slane %v23, %v88
    %v94 = vlaneseq
    %v95 = vshrl.u32 %v94, 7
    %v96 = vsub.s32 1, %v95
    %v97 = vrot.slane %v77, %v96
    %v98 = vlaneseq
    %v99 = vshrl.u32 %v98, 7
    %v100 = vsub.s32 1, %v99
    %v101 = vrot.slane %v81, %v100
    %v102 = vlaneseq
    %v103 = vshrl.u32 %v102, 7
    %v104 = vsub.s32 1, %v103
    %v105 = vrot.slane %v85, %v104
    %v106 = vlaneseq
    %v107 = vshrl.u32 %v106, 7
    %v108 = vsub.s32 1, %v107
    %v109 = vrot.slane %v89, %v108
    %v110 = vmul.f32 %v72, %v97
    %v111 = vmul.f32 %v72, %v101
    %v112 = vmul.f32 %v72, %v105
    %v113 = vmul.f32 %v72, %v109
    %v114 = vadd.f32 %v66, %v110
    %v115 = vadd.f32 %v67, %v111
    %v116 = vadd.f32 %v68, %v112
    %v117 = vadd.f32 %v69, %v113
    %v118 = vld [vmem:[%s2] sm:$0xf]
    %v120 = vlaneseq
    %v121 = vshrl.u32 %v120, 7
    %v122 = vsub.s32 0, %v121
    %v123 = vrot.slane %v118, %v122
    %v124 = vlaneseq
    %v125 = vshrl.u32 %v124, 7
    %v126 = vsub.s32 1, %v125
    %v127 = vrot.slane %v118, %v126
    %v128 = vlaneseq
    %v129 = vshrl.u32 %v128, 7
    %v130 = vsub.s32 2, %v129
    %v131 = vrot.slane %v118, %v130
    %v132 = vlaneseq
    %v133 = vshrl.u32 %v132, 7
    %v134 = vsub.s32 3, %v133
    %v135 = vrot.slane %v118, %v134
    %v140 = vadd.f32 %v114, %v123
    %v141 = vadd.f32 %v115, %v127
    %v142 = vadd.f32 %v116, %v131
    %v143 = vadd.f32 %v117, %v135
    %v144 = vmax.f32 %v140, 0.0
    %v145 = vmax.f32 %v141, 0.0
    %v146 = vmax.f32 %v142, 0.0
    %v147 = vmax.f32 %v143, 0.0
    %v148 = vpack.c.bf16 %v144, %v144
    %v149 = vpack.c.bf16 %v145, %v145
    %v150 = vpack.c.bf16 %v146, %v146
    %v151 = vpack.c.bf16 %v147, %v147
    %v152 = vld [vmem:[%s3] sm:$0xff]
    %v153 = vld [vmem:[%s3 + $0x8] sm:$0xff]
    %v154 = vld [vmem:[%s3 + $0x10] sm:$0xff]
    %v155 = vld [vmem:[%s3 + $0x18] sm:$0xf]
    %v156 = vld [vmem:[%s3 + $0x1c] sm:$0xff]
    %v157 = vld [vmem:[%s3 + $0x24] sm:$0xff]
    %v158 = vld [vmem:[%s3 + $0x2c] sm:$0xff]
    %v159 = vld [vmem:[%s3 + $0x34] sm:$0xf]
    %v160 = vld [vmem:[%s3 + $0x38] sm:$0xff]
    %v161 = vld [vmem:[%s3 + $0x40] sm:$0xff]
    %v162 = vld [vmem:[%s3 + $0x48] sm:$0xff]
    %v163 = vld [vmem:[%s3 + $0x50] sm:$0xf]
    %v164 = vld [vmem:[%s3 + $0x54] sm:$0xff]
    %v165 = vld [vmem:[%s3 + $0x5c] sm:$0xff]
    %v166 = vld [vmem:[%s3 + $0x64] sm:$0xff]
    %v167 = vld [vmem:[%s3 + $0x6c] sm:$0xf]
    %v168 = vld [vmem:[%s3 + $0x70] sm:$0xff]
    %v169 = vld [vmem:[%s3 + $0x78] sm:$0xff]
    %v170 = vld [vmem:[%s3 + $0x80] sm:$0xff]
    %v171 = vld [vmem:[%s3 + $0x88] sm:$0xf]
    %v172 = vld [vmem:[%s3 + $0x8c] sm:$0xff]
    %v173 = vld [vmem:[%s3 + $0x94] sm:$0xff]
    %v174 = vld [vmem:[%s3 + $0x9c] sm:$0xff]
    %v175 = vld [vmem:[%s3 + $0xa4] sm:$0xf]
    %v176 = vld [vmem:[%s3 + $0xa8] sm:$0xff]
    %v177 = vld [vmem:[%s3 + $0xb0] sm:$0xff]
    %v178 = vld [vmem:[%s3 + $0xb8] sm:$0xff]
    %v179 = vld [vmem:[%s3 + $0xc0] sm:$0xf]
    %v180 = vld [vmem:[%s3 + $0xc4] sm:$0xff]
    %v181 = vld [vmem:[%s3 + $0xcc] sm:$0xff]
    %v182 = vld [vmem:[%s3 + $0xd4] sm:$0xff]
    %v183 = vld [vmem:[%s3 + $0xdc] sm:$0xf]
    %v184 = vld [vmem:[%s3 + $0xe0] sm:$0xff]
    %v185 = vld [vmem:[%s3 + $0xe8] sm:$0xff]
    %v186 = vld [vmem:[%s3 + $0xf0] sm:$0xff]
    %v187 = vld [vmem:[%s3 + $0xf8] sm:$0xf]
    %v188 = vld [vmem:[%s3 + $0xfc] sm:$0xff]
    %v189 = vld [vmem:[%s3 + $0x104] sm:$0xff]
    %v190 = vld [vmem:[%s3 + $0x10c] sm:$0xff]
    %v191 = vld [vmem:[%s3 + $0x114] sm:$0xf]
    %v192 = vld [vmem:[%s3 + $0x118] sm:$0xff]
    %v193 = vld [vmem:[%s3 + $0x120] sm:$0xff]
    %v194 = vld [vmem:[%s3 + $0x128] sm:$0xff]
    %v195 = vld [vmem:[%s3 + $0x130] sm:$0xf]
    %v196 = vld [vmem:[%s3 + $0x134] sm:$0xff]
    %v197 = vld [vmem:[%s3 + $0x13c] sm:$0xff]
    %v198 = vld [vmem:[%s3 + $0x144] sm:$0xff]
    %v199 = vld [vmem:[%s3 + $0x14c] sm:$0xf]
    %v200 = vld [vmem:[%s3 + $0x150] sm:$0xff]
    %v201 = vld [vmem:[%s3 + $0x158] sm:$0xff]
    %v202 = vld [vmem:[%s3 + $0x160] sm:$0xff]
    %v203 = vld [vmem:[%s3 + $0x168] sm:$0xf]
    %v204 = vld [vmem:[%s3 + $0x16c] sm:$0xff]
    %v205 = vld [vmem:[%s3 + $0x174] sm:$0xff]
    %v206 = vld [vmem:[%s3 + $0x17c] sm:$0xff]
    %v207 = vld [vmem:[%s3 + $0x184] sm:$0xf]
    %v208 = vld [vmem:[%s3 + $0x188] sm:$0xff]
    %v209 = vld [vmem:[%s3 + $0x190] sm:$0xff]
    %v210 = vld [vmem:[%s3 + $0x198] sm:$0xff]
    %v211 = vld [vmem:[%s3 + $0x1a0] sm:$0xf]
    %v212 = vld [vmem:[%s3 + $0x1a4] sm:$0xff]
    %v213 = vld [vmem:[%s3 + $0x1ac] sm:$0xff]
    %v214 = vld [vmem:[%s3 + $0x1b4] sm:$0xff]
    %v215 = vld [vmem:[%s3 + $0x1bc] sm:$0xf]
    %v216 = vld [vmem:[%s3 + $0x1c0] sm:$0xff]
    %v217 = vld [vmem:[%s3 + $0x1c8] sm:$0xff]
    %v218 = vld [vmem:[%s3 + $0x1d0] sm:$0xff]
    %v219 = vld [vmem:[%s3 + $0x1d8] sm:$0xf]
    %v220 = vld [vmem:[%s3 + $0x1dc] sm:$0xff]
    %v221 = vld [vmem:[%s3 + $0x1e4] sm:$0xff]
    %v222 = vld [vmem:[%s3 + $0x1ec] sm:$0xff]
    %v223 = vld [vmem:[%s3 + $0x1f4] sm:$0xf]
    %v224 = vld [vmem:[%s3 + $0x1f8] sm:$0xff]
    %v225 = vld [vmem:[%s3 + $0x200] sm:$0xff]
    %v226 = vld [vmem:[%s3 + $0x208] sm:$0xff]
    %v227 = vld [vmem:[%s3 + $0x210] sm:$0xf]
    %v228 = vld [vmem:[%s3 + $0x214] sm:$0xff]
    %v229 = vld [vmem:[%s3 + $0x21c] sm:$0xff]
    %v230 = vld [vmem:[%s3 + $0x224] sm:$0xff]
    %v231 = vld [vmem:[%s3 + $0x22c] sm:$0xf]
    %v232 = vld [vmem:[%s3 + $0x230] sm:$0xff]
    %v233 = vld [vmem:[%s3 + $0x238] sm:$0xff]
    %v234 = vld [vmem:[%s3 + $0x240] sm:$0xff]
    %v235 = vld [vmem:[%s3 + $0x248] sm:$0xf]
    %v236 = vld [vmem:[%s3 + $0x24c] sm:$0xff]
    %v237 = vld [vmem:[%s3 + $0x254] sm:$0xff]
    %v238 = vld [vmem:[%s3 + $0x25c] sm:$0xff]
    %v239 = vld [vmem:[%s3 + $0x264] sm:$0xf]
    %v240 = vld [vmem:[%s3 + $0x268] sm:$0xff]
    %v241 = vld [vmem:[%s3 + $0x270] sm:$0xff]
    %v242 = vld [vmem:[%s3 + $0x278] sm:$0xff]
    %v243 = vld [vmem:[%s3 + $0x280] sm:$0xf]
    %v244 = vld [vmem:[%s3 + $0x284] sm:$0xff]
    %v245 = vld [vmem:[%s3 + $0x28c] sm:$0xff]
    %v246 = vld [vmem:[%s3 + $0x294] sm:$0xff]
    %v247 = vld [vmem:[%s3 + $0x29c] sm:$0xf]
    %v248 = vld [vmem:[%s3 + $0x2a0] sm:$0xff]
    %v249 = vld [vmem:[%s3 + $0x2a8] sm:$0xff]
    %v250 = vld [vmem:[%s3 + $0x2b0] sm:$0xff]
    %v251 = vld [vmem:[%s3 + $0x2b8] sm:$0xf]
    %v252 = vld [vmem:[%s3 + $0x2bc] sm:$0xff]
    %v253 = vld [vmem:[%s3 + $0x2c4] sm:$0xff]
    %v254 = vld [vmem:[%s3 + $0x2cc] sm:$0xff]
    %v255 = vld [vmem:[%s3 + $0x2d4] sm:$0xf]
    %v256 = vld [vmem:[%s3 + $0x2d8] sm:$0xff]
    %v257 = vld [vmem:[%s3 + $0x2e0] sm:$0xff]
    %v258 = vld [vmem:[%s3 + $0x2e8] sm:$0xff]
    %v259 = vld [vmem:[%s3 + $0x2f0] sm:$0xf]
    %v260 = vld [vmem:[%s3 + $0x2f4] sm:$0xff]
    %v261 = vld [vmem:[%s3 + $0x2fc] sm:$0xff]
    %v262 = vld [vmem:[%s3 + $0x304] sm:$0xff]
    %v263 = vld [vmem:[%s3 + $0x30c] sm:$0xf]
    %v264 = vld [vmem:[%s3 + $0x310] sm:$0xff]
    %v265 = vld [vmem:[%s3 + $0x318] sm:$0xff]
    %v266 = vld [vmem:[%s3 + $0x320] sm:$0xff]
    %v267 = vld [vmem:[%s3 + $0x328] sm:$0xf]
    %v268 = vld [vmem:[%s3 + $0x32c] sm:$0xff]
    %v269 = vld [vmem:[%s3 + $0x334] sm:$0xff]
    %v270 = vld [vmem:[%s3 + $0x33c] sm:$0xff]
    %v271 = vld [vmem:[%s3 + $0x344] sm:$0xf]
    %v272 = vld [vmem:[%s3 + $0x348] sm:$0xff]
    %v273 = vld [vmem:[%s3 + $0x350] sm:$0xff]
    %v274 = vld [vmem:[%s3 + $0x358] sm:$0xff]
    %v275 = vld [vmem:[%s3 + $0x360] sm:$0xf]
    %v276 = vld [vmem:[%s3 + $0x364] sm:$0xff]
    %v277 = vld [vmem:[%s3 + $0x36c] sm:$0xff]
    %v278 = vld [vmem:[%s3 + $0x374] sm:$0xff]
    %v279 = vld [vmem:[%s3 + $0x37c] sm:$0xf]
    %v280 = vld [vmem:[%s3 + $0x380] sm:$0xff]
    %v281 = vld [vmem:[%s3 + $0x388] sm:$0xff]
    %v282 = vld [vmem:[%s3 + $0x390] sm:$0xff]
    %v283 = vld [vmem:[%s3 + $0x398] sm:$0xf]
    %v284 = vld [vmem:[%s3 + $0x39c] sm:$0xff]
    %v285 = vld [vmem:[%s3 + $0x3a4] sm:$0xff]
    %v286 = vld [vmem:[%s3 + $0x3ac] sm:$0xff]
    %v287 = vld [vmem:[%s3 + $0x3b4] sm:$0xf]
    %v288 = vld [vmem:[%s3 + $0x3b8] sm:$0xff]
    %v289 = vld [vmem:[%s3 + $0x3c0] sm:$0xff]
    %v290 = vld [vmem:[%s3 + $0x3c8] sm:$0xff]
    %v291 = vld [vmem:[%s3 + $0x3d0] sm:$0xf]
    %v292 = vld [vmem:[%s3 + $0x3d4] sm:$0xff]
    %v293 = vld [vmem:[%s3 + $0x3dc] sm:$0xff]
    %v294 = vld [vmem:[%s3 + $0x3e4] sm:$0xff]
    %v295 = vld [vmem:[%s3 + $0x3ec] sm:$0xf]
    %v296 = vld [vmem:[%s3 + $0x3f0] sm:$0xff]
    %v297 = vld [vmem:[%s3 + $0x3f8] sm:$0xff]
    %v298 = vld [vmem:[%s3 + $0x400] sm:$0xff]
    %v299 = vld [vmem:[%s3 + $0x408] sm:$0xf]
    %v300 = vld [vmem:[%s3 + $0x40c] sm:$0xff]
    %v301 = vld [vmem:[%s3 + $0x414] sm:$0xff]
    %v302 = vld [vmem:[%s3 + $0x41c] sm:$0xff]
    %v303 = vld [vmem:[%s3 + $0x424] sm:$0xf]
    %v304 = vld [vmem:[%s3 + $0x428] sm:$0xff]
    %v305 = vld [vmem:[%s3 + $0x430] sm:$0xff]
    %v306 = vld [vmem:[%s3 + $0x438] sm:$0xff]
    %v307 = vld [vmem:[%s3 + $0x440] sm:$0xf]
    %v308 = vld [vmem:[%s3 + $0x444] sm:$0xff]
    %v309 = vld [vmem:[%s3 + $0x44c] sm:$0xff]
    %v310 = vld [vmem:[%s3 + $0x454] sm:$0xff]
    %v311 = vld [vmem:[%s3 + $0x45c] sm:$0xf]
    %v312 = vld [vmem:[%s3 + $0x460] sm:$0xff]
    %v313 = vld [vmem:[%s3 + $0x468] sm:$0xff]
    %v314 = vld [vmem:[%s3 + $0x470] sm:$0xff]
    %v315 = vld [vmem:[%s3 + $0x478] sm:$0xf]
    %v316 = vld [vmem:[%s3 + $0x47c] sm:$0xff]
    %v317 = vld [vmem:[%s3 + $0x484] sm:$0xff]
    %v318 = vld [vmem:[%s3 + $0x48c] sm:$0xff]
    %v319 = vld [vmem:[%s3 + $0x494] sm:$0xf]
    %v320 = vld [vmem:[%s3 + $0x498] sm:$0xff]
    %v321 = vld [vmem:[%s3 + $0x4a0] sm:$0xff]
    %v322 = vld [vmem:[%s3 + $0x4a8] sm:$0xff]
    %v323 = vld [vmem:[%s3 + $0x4b0] sm:$0xf]
    %v324 = vld [vmem:[%s3 + $0x4b4] sm:$0xff]
    %v325 = vld [vmem:[%s3 + $0x4bc] sm:$0xff]
    %v326 = vld [vmem:[%s3 + $0x4c4] sm:$0xff]
    %v327 = vld [vmem:[%s3 + $0x4cc] sm:$0xf]
    %v328 = vld [vmem:[%s3 + $0x4d0] sm:$0xff]
    %v329 = vld [vmem:[%s3 + $0x4d8] sm:$0xff]
    %v330 = vld [vmem:[%s3 + $0x4e0] sm:$0xff]
    %v331 = vld [vmem:[%s3 + $0x4e8] sm:$0xf]
    %v332 = vld [vmem:[%s3 + $0x4ec] sm:$0xff]
    %v333 = vld [vmem:[%s3 + $0x4f4] sm:$0xff]
    %v334 = vld [vmem:[%s3 + $0x4fc] sm:$0xff]
    %v335 = vld [vmem:[%s3 + $0x504] sm:$0xf]
    %v336 = vld [vmem:[%s3 + $0x508] sm:$0xff]
    %v337 = vld [vmem:[%s3 + $0x510] sm:$0xff]
    %v338 = vld [vmem:[%s3 + $0x518] sm:$0xff]
    %v339 = vld [vmem:[%s3 + $0x520] sm:$0xf]
    %v340 = vld [vmem:[%s3 + $0x524] sm:$0xff]
    %v341 = vld [vmem:[%s3 + $0x52c] sm:$0xff]
    %v342 = vld [vmem:[%s3 + $0x534] sm:$0xff]
    %v343 = vld [vmem:[%s3 + $0x53c] sm:$0xf]
    %v344 = vld [vmem:[%s3 + $0x540] sm:$0xff]
    %v345 = vld [vmem:[%s3 + $0x548] sm:$0xff]
    %v346 = vld [vmem:[%s3 + $0x550] sm:$0xff]
    %v347 = vld [vmem:[%s3 + $0x558] sm:$0xf]
    %v348 = vld [vmem:[%s3 + $0x55c] sm:$0xff]
    %v349 = vld [vmem:[%s3 + $0x564] sm:$0xff]
    %v350 = vld [vmem:[%s3 + $0x56c] sm:$0xff]
    %v351 = vld [vmem:[%s3 + $0x574] sm:$0xf]
    %v352 = vld [vmem:[%s3 + $0x578] sm:$0xff]
    %v353 = vld [vmem:[%s3 + $0x580] sm:$0xff]
    %v354 = vld [vmem:[%s3 + $0x588] sm:$0xff]
    %v355 = vld [vmem:[%s3 + $0x590] sm:$0xf]
    %v356 = vld [vmem:[%s3 + $0x594] sm:$0xff]
    %v357 = vld [vmem:[%s3 + $0x59c] sm:$0xff]
    %v358 = vld [vmem:[%s3 + $0x5a4] sm:$0xff]
    %v359 = vld [vmem:[%s3 + $0x5ac] sm:$0xf]
    %v360 = vld [vmem:[%s3 + $0x5b0] sm:$0xff]
    %v361 = vld [vmem:[%s3 + $0x5b8] sm:$0xff]
    %v362 = vld [vmem:[%s3 + $0x5c0] sm:$0xff]
    %v363 = vld [vmem:[%s3 + $0x5c8] sm:$0xf]
    %v364 = vld [vmem:[%s3 + $0x5cc] sm:$0xff]
    %v365 = vld [vmem:[%s3 + $0x5d4] sm:$0xff]
    %v366 = vld [vmem:[%s3 + $0x5dc] sm:$0xff]
    %v367 = vld [vmem:[%s3 + $0x5e4] sm:$0xf]
    %v368 = vld [vmem:[%s3 + $0x5e8] sm:$0xff]
    %v369 = vld [vmem:[%s3 + $0x5f0] sm:$0xff]
    %v370 = vld [vmem:[%s3 + $0x5f8] sm:$0xff]
    %v371 = vld [vmem:[%s3 + $0x600] sm:$0xf]
    %v372 = vld [vmem:[%s3 + $0x604] sm:$0xff]
    %v373 = vld [vmem:[%s3 + $0x60c] sm:$0xff]
    %v374 = vld [vmem:[%s3 + $0x614] sm:$0xff]
    %v375 = vld [vmem:[%s3 + $0x61c] sm:$0xf]
    %v376 = vld [vmem:[%s3 + $0x620] sm:$0xff]
    %v377 = vld [vmem:[%s3 + $0x628] sm:$0xff]
    %v378 = vld [vmem:[%s3 + $0x630] sm:$0xff]
    %v379 = vld [vmem:[%s3 + $0x638] sm:$0xf]
    %v380 = vld [vmem:[%s3 + $0x63c] sm:$0xff]
    %v381 = vld [vmem:[%s3 + $0x644] sm:$0xff]
    %v382 = vld [vmem:[%s3 + $0x64c] sm:$0xff]
    %v383 = vld [vmem:[%s3 + $0x654] sm:$0xf]
    %v384 = vld [vmem:[%s3 + $0x658] sm:$0xff]
    %v385 = vld [vmem:[%s3 + $0x660] sm:$0xff]
    %v386 = vld [vmem:[%s3 + $0x668] sm:$0xff]
    %v387 = vld [vmem:[%s3 + $0x670] sm:$0xf]
    %v388 = vld [vmem:[%s3 + $0x674] sm:$0xff]
    %v389 = vld [vmem:[%s3 + $0x67c] sm:$0xff]
    %v390 = vld [vmem:[%s3 + $0x684] sm:$0xff]
    %v391 = vld [vmem:[%s3 + $0x68c] sm:$0xf]
    %v392 = vld [vmem:[%s3 + $0x690] sm:$0xff]
    %v393 = vld [vmem:[%s3 + $0x698] sm:$0xff]
    %v394 = vld [vmem:[%s3 + $0x6a0] sm:$0xff]
    %v395 = vld [vmem:[%s3 + $0x6a8] sm:$0xf]
    %v396 = vld [vmem:[%s3 + $0x6ac] sm:$0xff]
    %v397 = vld [vmem:[%s3 + $0x6b4] sm:$0xff]
    %v398 = vld [vmem:[%s3 + $0x6bc] sm:$0xff]
    %v399 = vld [vmem:[%s3 + $0x6c4] sm:$0xf]
    %v400 = vld [vmem:[%s3 + $0x6c8] sm:$0xff]
    %v401 = vld [vmem:[%s3 + $0x6d0] sm:$0xff]
    %v402 = vld [vmem:[%s3 + $0x6d8] sm:$0xff]
    %v403 = vld [vmem:[%s3 + $0x6e0] sm:$0xf]
    %v404 = vld [vmem:[%s3 + $0x6e4] sm:$0xff]
    %v405 = vld [vmem:[%s3 + $0x6ec] sm:$0xff]
    %v406 = vld [vmem:[%s3 + $0x6f4] sm:$0xff]
    %v407 = vld [vmem:[%s3 + $0x6fc] sm:$0xf]
    %v408 = vld [vmem:[%s4] sm:$0x7f]
    %v410 = vlaneseq
    %v411 = vshrl.u32 %v410, 7
    %v412 = vsub.s32 0, %v411
    %v413 = vrot.slane %v408, %v412
    %v414 = vlaneseq
    %v415 = vshrl.u32 %v414, 7
    %v416 = vsub.s32 1, %v415
    %v417 = vrot.slane %v408, %v416
    %v418 = vlaneseq
    %v419 = vshrl.u32 %v418, 7
    %v420 = vsub.s32 2, %v419
    %v421 = vrot.slane %v408, %v420
    %v422 = vlaneseq
    %v423 = vshrl.u32 %v422, 7
    %v424 = vsub.s32 3, %v423
    %v425 = vrot.slane %v408, %v424
    %v426 = vlaneseq
    %v427 = vshrl.u32 %v426, 7
    %v428 = vsub.s32 4, %v427
    %v429 = vrot.slane %v408, %v428
    %v430 = vlaneseq
    %v431 = vshrl.u32 %v430, 7
    %v432 = vsub.s32 5, %v431
    %v433 = vrot.slane %v408, %v432
    %v434 = vlaneseq
    %v435 = vshrl.u32 %v434, 7
    %v436 = vsub.s32 6, %v435
    %v437 = vrot.slane %v408, %v436
    %v701 = vunpack.c.l.b16 %v152
    %v702 = vunpack.c.h.b16 %v152
    %v703 = vunpack.c.l.b16 %v153
    %v704 = vunpack.c.h.b16 %v153
    %v705 = vunpack.c.l.b16 %v154
    %v706 = vunpack.c.h.b16 %v154
    %v707 = vunpack.c.l.b16 %v155
    %v708 = vunpack.c.l.b16 %v156
    %v709 = vunpack.c.h.b16 %v156
    %v710 = vunpack.c.l.b16 %v157
    %v711 = vunpack.c.h.b16 %v157
    %v712 = vunpack.c.l.b16 %v158
    %v713 = vunpack.c.h.b16 %v158
    %v714 = vunpack.c.l.b16 %v159
    %v715 = vunpack.c.l.b16 %v160
    %v716 = vunpack.c.h.b16 %v160
    %v717 = vunpack.c.l.b16 %v161
    %v718 = vunpack.c.h.b16 %v161
    %v719 = vunpack.c.l.b16 %v162
    %v720 = vunpack.c.h.b16 %v162
    %v721 = vunpack.c.l.b16 %v163
    %v722 = vunpack.c.l.b16 %v164
    %v723 = vunpack.c.h.b16 %v164
    %v724 = vunpack.c.l.b16 %v165
    %v725 = vunpack.c.h.b16 %v165
    %v726 = vunpack.c.l.b16 %v166
    %v727 = vunpack.c.h.b16 %v166
    %v728 = vunpack.c.l.b16 %v167
    %v729 = vunpack.c.l.b16 %v168
    %v730 = vunpack.c.h.b16 %v168
    %v731 = vunpack.c.l.b16 %v169
    %v732 = vunpack.c.h.b16 %v169
    %v733 = vunpack.c.l.b16 %v170
    %v734 = vunpack.c.h.b16 %v170
    %v735 = vunpack.c.l.b16 %v171
    %v736 = vunpack.c.l.b16 %v172
    %v737 = vunpack.c.h.b16 %v172
    %v738 = vunpack.c.l.b16 %v173
    %v739 = vunpack.c.h.b16 %v173
    %v740 = vunpack.c.l.b16 %v174
    %v741 = vunpack.c.h.b16 %v174
    %v742 = vunpack.c.l.b16 %v175
    %v743 = vunpack.c.l.b16 %v176
    %v744 = vunpack.c.h.b16 %v176
    %v745 = vunpack.c.l.b16 %v177
    %v746 = vunpack.c.h.b16 %v177
    %v747 = vunpack.c.l.b16 %v178
    %v748 = vunpack.c.h.b16 %v178
    %v749 = vunpack.c.l.b16 %v179
    %v750 = vunpack.c.l.b16 %v180
    %v751 = vunpack.c.h.b16 %v180
    %v752 = vunpack.c.l.b16 %v181
    %v753 = vunpack.c.h.b16 %v181
    %v754 = vunpack.c.l.b16 %v182
    %v755 = vunpack.c.h.b16 %v182
    %v756 = vunpack.c.l.b16 %v183
    %v757 = vunpack.c.l.b16 %v184
    %v758 = vunpack.c.h.b16 %v184
    %v759 = vunpack.c.l.b16 %v185
    %v760 = vunpack.c.h.b16 %v185
    %v761 = vunpack.c.l.b16 %v186
    %v762 = vunpack.c.h.b16 %v186
    %v763 = vunpack.c.l.b16 %v187
    %v764 = vunpack.c.l.b16 %v188
    %v765 = vunpack.c.h.b16 %v188
    %v766 = vunpack.c.l.b16 %v189
    %v767 = vunpack.c.h.b16 %v189
    %v768 = vunpack.c.l.b16 %v190
    %v769 = vunpack.c.h.b16 %v190
    %v770 = vunpack.c.l.b16 %v191
    %v771 = vunpack.c.l.b16 %v192
    %v772 = vunpack.c.h.b16 %v192
    %v773 = vunpack.c.l.b16 %v193
    %v774 = vunpack.c.h.b16 %v193
    %v775 = vunpack.c.l.b16 %v194
    %v776 = vunpack.c.h.b16 %v194
    %v777 = vunpack.c.l.b16 %v195
    %v778 = vunpack.c.l.b16 %v196
    %v779 = vunpack.c.h.b16 %v196
    %v780 = vunpack.c.l.b16 %v197
    %v781 = vunpack.c.h.b16 %v197
    %v782 = vunpack.c.l.b16 %v198
    %v783 = vunpack.c.h.b16 %v198
    %v784 = vunpack.c.l.b16 %v199
    %v785 = vunpack.c.l.b16 %v200
    %v786 = vunpack.c.h.b16 %v200
    %v787 = vunpack.c.l.b16 %v201
    %v788 = vunpack.c.h.b16 %v201
    %v789 = vunpack.c.l.b16 %v202
    %v790 = vunpack.c.h.b16 %v202
    %v791 = vunpack.c.l.b16 %v203
    %v792 = vunpack.c.l.b16 %v204
    %v793 = vunpack.c.h.b16 %v204
    %v794 = vunpack.c.l.b16 %v205
    %v795 = vunpack.c.h.b16 %v205
    %v796 = vunpack.c.l.b16 %v206
    %v797 = vunpack.c.h.b16 %v206
    %v798 = vunpack.c.l.b16 %v207
    %v799 = vunpack.c.l.b16 %v208
    %v800 = vunpack.c.h.b16 %v208
    %v801 = vunpack.c.l.b16 %v209
    %v802 = vunpack.c.h.b16 %v209
    %v803 = vunpack.c.l.b16 %v210
    %v804 = vunpack.c.h.b16 %v210
    %v805 = vunpack.c.l.b16 %v211
    %v806 = vunpack.c.l.b16 %v212
    %v807 = vunpack.c.h.b16 %v212
    %v808 = vunpack.c.l.b16 %v213
    %v809 = vunpack.c.h.b16 %v213
    %v810 = vunpack.c.l.b16 %v214
    %v811 = vunpack.c.h.b16 %v214
    %v812 = vunpack.c.l.b16 %v215
    %v813 = vunpack.c.l.b16 %v216
    %v814 = vunpack.c.h.b16 %v216
    %v815 = vunpack.c.l.b16 %v217
    %v816 = vunpack.c.h.b16 %v217
    %v817 = vunpack.c.l.b16 %v218
    %v818 = vunpack.c.h.b16 %v218
    %v819 = vunpack.c.l.b16 %v219
    %v820 = vunpack.c.l.b16 %v220
    %v821 = vunpack.c.h.b16 %v220
    %v822 = vunpack.c.l.b16 %v221
    %v823 = vunpack.c.h.b16 %v221
    %v824 = vunpack.c.l.b16 %v222
    %v825 = vunpack.c.h.b16 %v222
    %v826 = vunpack.c.l.b16 %v223
    %v827 = vunpack.c.l.b16 %v224
    %v828 = vunpack.c.h.b16 %v224
    %v829 = vunpack.c.l.b16 %v225
    %v830 = vunpack.c.h.b16 %v225
    %v831 = vunpack.c.l.b16 %v226
    %v832 = vunpack.c.h.b16 %v226
    %v833 = vunpack.c.l.b16 %v227
    %v834 = vunpack.c.l.b16 %v228
    %v835 = vunpack.c.h.b16 %v228
    %v836 = vunpack.c.l.b16 %v229
    %v837 = vunpack.c.h.b16 %v229
    %v838 = vunpack.c.l.b16 %v230
    %v839 = vunpack.c.h.b16 %v230
    %v840 = vunpack.c.l.b16 %v231
    %v841 = vunpack.c.l.b16 %v232
    %v842 = vunpack.c.h.b16 %v232
    %v843 = vunpack.c.l.b16 %v233
    %v844 = vunpack.c.h.b16 %v233
    %v845 = vunpack.c.l.b16 %v234
    %v846 = vunpack.c.h.b16 %v234
    %v847 = vunpack.c.l.b16 %v235
    %v848 = vunpack.c.l.b16 %v236
    %v849 = vunpack.c.h.b16 %v236
    %v850 = vunpack.c.l.b16 %v237
    %v851 = vunpack.c.h.b16 %v237
    %v852 = vunpack.c.l.b16 %v238
    %v853 = vunpack.c.h.b16 %v238
    %v854 = vunpack.c.l.b16 %v239
    %v855 = vunpack.c.l.b16 %v240
    %v856 = vunpack.c.h.b16 %v240
    %v857 = vunpack.c.l.b16 %v241
    %v858 = vunpack.c.h.b16 %v241
    %v859 = vunpack.c.l.b16 %v242
    %v860 = vunpack.c.h.b16 %v242
    %v861 = vunpack.c.l.b16 %v243
    %v862 = vunpack.c.l.b16 %v244
    %v863 = vunpack.c.h.b16 %v244
    %v864 = vunpack.c.l.b16 %v245
    %v865 = vunpack.c.h.b16 %v245
    %v866 = vunpack.c.l.b16 %v246
    %v867 = vunpack.c.h.b16 %v246
    %v868 = vunpack.c.l.b16 %v247
    %v869 = vunpack.c.l.b16 %v248
    %v870 = vunpack.c.h.b16 %v248
    %v871 = vunpack.c.l.b16 %v249
    %v872 = vunpack.c.h.b16 %v249
    %v873 = vunpack.c.l.b16 %v250
    %v874 = vunpack.c.h.b16 %v250
    %v875 = vunpack.c.l.b16 %v251
    %v876 = vunpack.c.l.b16 %v252
    %v877 = vunpack.c.h.b16 %v252
    %v878 = vunpack.c.l.b16 %v253
    %v879 = vunpack.c.h.b16 %v253
    %v880 = vunpack.c.l.b16 %v254
    %v881 = vunpack.c.h.b16 %v254
    %v882 = vunpack.c.l.b16 %v255
    %v883 = vunpack.c.l.b16 %v256
    %v884 = vunpack.c.h.b16 %v256
    %v885 = vunpack.c.l.b16 %v257
    %v886 = vunpack.c.h.b16 %v257
    %v887 = vunpack.c.l.b16 %v258
    %v888 = vunpack.c.h.b16 %v258
    %v889 = vunpack.c.l.b16 %v259
    %v890 = vunpack.c.l.b16 %v260
    %v891 = vunpack.c.h.b16 %v260
    %v892 = vunpack.c.l.b16 %v261
    %v893 = vunpack.c.h.b16 %v261
    %v894 = vunpack.c.l.b16 %v262
    %v895 = vunpack.c.h.b16 %v262
    %v896 = vunpack.c.l.b16 %v263
    %v897 = vunpack.c.l.b16 %v264
    %v898 = vunpack.c.h.b16 %v264
    %v899 = vunpack.c.l.b16 %v265
    %v900 = vunpack.c.h.b16 %v265
    %v901 = vunpack.c.l.b16 %v266
    %v902 = vunpack.c.h.b16 %v266
    %v903 = vunpack.c.l.b16 %v267
    %v904 = vunpack.c.l.b16 %v268
    %v905 = vunpack.c.h.b16 %v268
    %v906 = vunpack.c.l.b16 %v269
    %v907 = vunpack.c.h.b16 %v269
    %v908 = vunpack.c.l.b16 %v270
    %v909 = vunpack.c.h.b16 %v270
    %v910 = vunpack.c.l.b16 %v271
    %v911 = vunpack.c.l.b16 %v272
    %v912 = vunpack.c.h.b16 %v272
    %v913 = vunpack.c.l.b16 %v273
    %v914 = vunpack.c.h.b16 %v273
    %v915 = vunpack.c.l.b16 %v274
    %v916 = vunpack.c.h.b16 %v274
    %v917 = vunpack.c.l.b16 %v275
    %v918 = vunpack.c.l.b16 %v276
    %v919 = vunpack.c.h.b16 %v276
    %v920 = vunpack.c.l.b16 %v277
    %v921 = vunpack.c.h.b16 %v277
    %v922 = vunpack.c.l.b16 %v278
    %v923 = vunpack.c.h.b16 %v278
    %v924 = vunpack.c.l.b16 %v279
    %v925 = vunpack.c.l.b16 %v280
    %v926 = vunpack.c.h.b16 %v280
    %v927 = vunpack.c.l.b16 %v281
    %v928 = vunpack.c.h.b16 %v281
    %v929 = vunpack.c.l.b16 %v282
    %v930 = vunpack.c.h.b16 %v282
    %v931 = vunpack.c.l.b16 %v283
    %v932 = vunpack.c.l.b16 %v284
    %v933 = vunpack.c.h.b16 %v284
    %v934 = vunpack.c.l.b16 %v285
    %v935 = vunpack.c.h.b16 %v285
    %v936 = vunpack.c.l.b16 %v286
    %v937 = vunpack.c.h.b16 %v286
    %v938 = vunpack.c.l.b16 %v287
    %v939 = vunpack.c.l.b16 %v288
    %v940 = vunpack.c.h.b16 %v288
    %v941 = vunpack.c.l.b16 %v289
    %v942 = vunpack.c.h.b16 %v289
    %v943 = vunpack.c.l.b16 %v290
    %v944 = vunpack.c.h.b16 %v290
    %v945 = vunpack.c.l.b16 %v291
    %v946 = vunpack.c.l.b16 %v292
    %v947 = vunpack.c.h.b16 %v292
    %v948 = vunpack.c.l.b16 %v293
    %v949 = vunpack.c.h.b16 %v293
    %v950 = vunpack.c.l.b16 %v294
    %v951 = vunpack.c.h.b16 %v294
    %v952 = vunpack.c.l.b16 %v295
    %v953 = vunpack.c.l.b16 %v296
    %v954 = vunpack.c.h.b16 %v296
    %v955 = vunpack.c.l.b16 %v297
    %v956 = vunpack.c.h.b16 %v297
    %v957 = vunpack.c.l.b16 %v298
    %v958 = vunpack.c.h.b16 %v298
    %v959 = vunpack.c.l.b16 %v299
    %v960 = vunpack.c.l.b16 %v300
    %v961 = vunpack.c.h.b16 %v300
    %v962 = vunpack.c.l.b16 %v301
    %v963 = vunpack.c.h.b16 %v301
    %v964 = vunpack.c.l.b16 %v302
    %v965 = vunpack.c.h.b16 %v302
    %v966 = vunpack.c.l.b16 %v303
    %v967 = vunpack.c.l.b16 %v304
    %v968 = vunpack.c.h.b16 %v304
    %v969 = vunpack.c.l.b16 %v305
    %v970 = vunpack.c.h.b16 %v305
    %v971 = vunpack.c.l.b16 %v306
    %v972 = vunpack.c.h.b16 %v306
    %v973 = vunpack.c.l.b16 %v307
    %v974 = vunpack.c.l.b16 %v308
    %v975 = vunpack.c.h.b16 %v308
    %v976 = vunpack.c.l.b16 %v309
    %v977 = vunpack.c.h.b16 %v309
    %v978 = vunpack.c.l.b16 %v310
    %v979 = vunpack.c.h.b16 %v310
    %v980 = vunpack.c.l.b16 %v311
    %v981 = vunpack.c.l.b16 %v312
    %v982 = vunpack.c.h.b16 %v312
    %v983 = vunpack.c.l.b16 %v313
    %v984 = vunpack.c.h.b16 %v313
    %v985 = vunpack.c.l.b16 %v314
    %v986 = vunpack.c.h.b16 %v314
    %v987 = vunpack.c.l.b16 %v315
    %v988 = vunpack.c.l.b16 %v316
    %v989 = vunpack.c.h.b16 %v316
    %v990 = vunpack.c.l.b16 %v317
    %v991 = vunpack.c.h.b16 %v317
    %v992 = vunpack.c.l.b16 %v318
    %v993 = vunpack.c.h.b16 %v318
    %v994 = vunpack.c.l.b16 %v319
    %v995 = vunpack.c.l.b16 %v320
    %v996 = vunpack.c.h.b16 %v320
    %v997 = vunpack.c.l.b16 %v321
    %v998 = vunpack.c.h.b16 %v321
    %v999 = vunpack.c.l.b16 %v322
    %v1000 = vunpack.c.h.b16 %v322
    %v1001 = vunpack.c.l.b16 %v323
    %v1002 = vunpack.c.l.b16 %v324
    %v1003 = vunpack.c.h.b16 %v324
    %v1004 = vunpack.c.l.b16 %v325
    %v1005 = vunpack.c.h.b16 %v325
    %v1006 = vunpack.c.l.b16 %v326
    %v1007 = vunpack.c.h.b16 %v326
    %v1008 = vunpack.c.l.b16 %v327
    %v1009 = vunpack.c.l.b16 %v328
    %v1010 = vunpack.c.h.b16 %v328
    %v1011 = vunpack.c.l.b16 %v329
    %v1012 = vunpack.c.h.b16 %v329
    %v1013 = vunpack.c.l.b16 %v330
    %v1014 = vunpack.c.h.b16 %v330
    %v1015 = vunpack.c.l.b16 %v331
    %v1016 = vunpack.c.l.b16 %v332
    %v1017 = vunpack.c.h.b16 %v332
    %v1018 = vunpack.c.l.b16 %v333
    %v1019 = vunpack.c.h.b16 %v333
    %v1020 = vunpack.c.l.b16 %v334
    %v1021 = vunpack.c.h.b16 %v334
    %v1022 = vunpack.c.l.b16 %v335
    %v1023 = vunpack.c.l.b16 %v336
    %v1024 = vunpack.c.h.b16 %v336
    %v1025 = vunpack.c.l.b16 %v337
    %v1026 = vunpack.c.h.b16 %v337
    %v1027 = vunpack.c.l.b16 %v338
    %v1028 = vunpack.c.h.b16 %v338
    %v1029 = vunpack.c.l.b16 %v339
    %v1030 = vunpack.c.l.b16 %v340
    %v1031 = vunpack.c.h.b16 %v340
    %v1032 = vunpack.c.l.b16 %v341
    %v1033 = vunpack.c.h.b16 %v341
    %v1034 = vunpack.c.l.b16 %v342
    %v1035 = vunpack.c.h.b16 %v342
    %v1036 = vunpack.c.l.b16 %v343
    %v1037 = vunpack.c.l.b16 %v344
    %v1038 = vunpack.c.h.b16 %v344
    %v1039 = vunpack.c.l.b16 %v345
    %v1040 = vunpack.c.h.b16 %v345
    %v1041 = vunpack.c.l.b16 %v346
    %v1042 = vunpack.c.h.b16 %v346
    %v1043 = vunpack.c.l.b16 %v347
    %v1044 = vunpack.c.l.b16 %v348
    %v1045 = vunpack.c.h.b16 %v348
    %v1046 = vunpack.c.l.b16 %v349
    %v1047 = vunpack.c.h.b16 %v349
    %v1048 = vunpack.c.l.b16 %v350
    %v1049 = vunpack.c.h.b16 %v350
    %v1050 = vunpack.c.l.b16 %v351
    %v1051 = vunpack.c.l.b16 %v352
    %v1052 = vunpack.c.h.b16 %v352
    %v1053 = vunpack.c.l.b16 %v353
    %v1054 = vunpack.c.h.b16 %v353
    %v1055 = vunpack.c.l.b16 %v354
    %v1056 = vunpack.c.h.b16 %v354
    %v1057 = vunpack.c.l.b16 %v355
    %v1058 = vunpack.c.l.b16 %v356
    %v1059 = vunpack.c.h.b16 %v356
    %v1060 = vunpack.c.l.b16 %v357
    %v1061 = vunpack.c.h.b16 %v357
    %v1062 = vunpack.c.l.b16 %v358
    %v1063 = vunpack.c.h.b16 %v358
    %v1064 = vunpack.c.l.b16 %v359
    %v1065 = vunpack.c.l.b16 %v360
    %v1066 = vunpack.c.h.b16 %v360
    %v1067 = vunpack.c.l.b16 %v361
    %v1068 = vunpack.c.h.b16 %v361
    %v1069 = vunpack.c.l.b16 %v362
    %v1070 = vunpack.c.h.b16 %v362
    %v1071 = vunpack.c.l.b16 %v363
    %v1072 = vunpack.c.l.b16 %v364
    %v1073 = vunpack.c.h.b16 %v364
    %v1074 = vunpack.c.l.b16 %v365
    %v1075 = vunpack.c.h.b16 %v365
    %v1076 = vunpack.c.l.b16 %v366
    %v1077 = vunpack.c.h.b16 %v366
    %v1078 = vunpack.c.l.b16 %v367
    %v1079 = vunpack.c.l.b16 %v368
    %v1080 = vunpack.c.h.b16 %v368
    %v1081 = vunpack.c.l.b16 %v369
    %v1082 = vunpack.c.h.b16 %v369
    %v1083 = vunpack.c.l.b16 %v370
    %v1084 = vunpack.c.h.b16 %v370
    %v1085 = vunpack.c.l.b16 %v371
    %v1086 = vunpack.c.l.b16 %v372
    %v1087 = vunpack.c.h.b16 %v372
    %v1088 = vunpack.c.l.b16 %v373
    %v1089 = vunpack.c.h.b16 %v373
    %v1090 = vunpack.c.l.b16 %v374
    %v1091 = vunpack.c.h.b16 %v374
    %v1092 = vunpack.c.l.b16 %v375
    %v1093 = vunpack.c.l.b16 %v376
    %v1094 = vunpack.c.h.b16 %v376
    %v1095 = vunpack.c.l.b16 %v377
    %v1096 = vunpack.c.h.b16 %v377
    %v1097 = vunpack.c.l.b16 %v378
    %v1098 = vunpack.c.h.b16 %v378
    %v1099 = vunpack.c.l.b16 %v379
    %v1100 = vunpack.c.l.b16 %v380
    %v1101 = vunpack.c.h.b16 %v380
    %v1102 = vunpack.c.l.b16 %v381
    %v1103 = vunpack.c.h.b16 %v381
    %v1104 = vunpack.c.l.b16 %v382
    %v1105 = vunpack.c.h.b16 %v382
    %v1106 = vunpack.c.l.b16 %v383
    %v1107 = vunpack.c.l.b16 %v384
    %v1108 = vunpack.c.h.b16 %v384
    %v1109 = vunpack.c.l.b16 %v385
    %v1110 = vunpack.c.h.b16 %v385
    %v1111 = vunpack.c.l.b16 %v386
    %v1112 = vunpack.c.h.b16 %v386
    %v1113 = vunpack.c.l.b16 %v387
    %v1114 = vunpack.c.l.b16 %v388
    %v1115 = vunpack.c.h.b16 %v388
    %v1116 = vunpack.c.l.b16 %v389
    %v1117 = vunpack.c.h.b16 %v389
    %v1118 = vunpack.c.l.b16 %v390
    %v1119 = vunpack.c.h.b16 %v390
    %v1120 = vunpack.c.l.b16 %v391
    %v1121 = vunpack.c.l.b16 %v392
    %v1122 = vunpack.c.h.b16 %v392
    %v1123 = vunpack.c.l.b16 %v393
    %v1124 = vunpack.c.h.b16 %v393
    %v1125 = vunpack.c.l.b16 %v394
    %v1126 = vunpack.c.h.b16 %v394
    %v1127 = vunpack.c.l.b16 %v395
    %v1128 = vunpack.c.l.b16 %v396
    %v1129 = vunpack.c.h.b16 %v396
    %v1130 = vunpack.c.l.b16 %v397
    %v1131 = vunpack.c.h.b16 %v397
    %v1132 = vunpack.c.l.b16 %v398
    %v1133 = vunpack.c.h.b16 %v398
    %v1134 = vunpack.c.l.b16 %v399
    %v1135 = vunpack.c.l.b16 %v400
    %v1136 = vunpack.c.h.b16 %v400
    %v1137 = vunpack.c.l.b16 %v401
    %v1138 = vunpack.c.h.b16 %v401
    %v1139 = vunpack.c.l.b16 %v402
    %v1140 = vunpack.c.h.b16 %v402
    %v1141 = vunpack.c.l.b16 %v403
    %v1142 = vunpack.c.l.b16 %v404
    %v1143 = vunpack.c.h.b16 %v404
    %v1144 = vunpack.c.l.b16 %v405
    %v1145 = vunpack.c.h.b16 %v405
    %v1146 = vunpack.c.l.b16 %v406
    %v1147 = vunpack.c.h.b16 %v406
    %v1148 = vunpack.c.l.b16 %v407
    %v1149 = vpack.c.b16 %v708, %v701
    %v1150 = vpack.c.b16 %v709, %v702
    %v1151 = vpack.c.b16 %v710, %v703
    %v1152 = vpack.c.b16 %v711, %v704
    %v1153 = vpack.c.b16 %v712, %v705
    %v1154 = vpack.c.b16 %v713, %v706
    %v1155 = vpack.c.b16 %v714, %v707
    %v1156 = vpack.c.b16 %v722, %v715
    %v1157 = vpack.c.b16 %v723, %v716
    %v1158 = vpack.c.b16 %v724, %v717
    %v1159 = vpack.c.b16 %v725, %v718
    %v1160 = vpack.c.b16 %v726, %v719
    %v1161 = vpack.c.b16 %v727, %v720
    %v1162 = vpack.c.b16 %v728, %v721
    %v1163 = vpack.c.b16 %v736, %v729
    %v1164 = vpack.c.b16 %v737, %v730
    %v1165 = vpack.c.b16 %v738, %v731
    %v1166 = vpack.c.b16 %v739, %v732
    %v1167 = vpack.c.b16 %v740, %v733
    %v1168 = vpack.c.b16 %v741, %v734
    %v1169 = vpack.c.b16 %v742, %v735
    %v1170 = vpack.c.b16 %v750, %v743
    %v1171 = vpack.c.b16 %v751, %v744
    %v1172 = vpack.c.b16 %v752, %v745
    %v1173 = vpack.c.b16 %v753, %v746
    %v1174 = vpack.c.b16 %v754, %v747
    %v1175 = vpack.c.b16 %v755, %v748
    %v1176 = vpack.c.b16 %v756, %v749
    %v1177 = vpack.c.b16 %v764, %v757
    %v1178 = vpack.c.b16 %v765, %v758
    %v1179 = vpack.c.b16 %v766, %v759
    %v1180 = vpack.c.b16 %v767, %v760
    %v1181 = vpack.c.b16 %v768, %v761
    %v1182 = vpack.c.b16 %v769, %v762
    %v1183 = vpack.c.b16 %v770, %v763
    %v1184 = vpack.c.b16 %v778, %v771
    %v1185 = vpack.c.b16 %v779, %v772
    %v1186 = vpack.c.b16 %v780, %v773
    %v1187 = vpack.c.b16 %v781, %v774
    %v1188 = vpack.c.b16 %v782, %v775
    %v1189 = vpack.c.b16 %v783, %v776
    %v1190 = vpack.c.b16 %v784, %v777
    %v1191 = vpack.c.b16 %v792, %v785
    %v1192 = vpack.c.b16 %v793, %v786
    %v1193 = vpack.c.b16 %v794, %v787
    %v1194 = vpack.c.b16 %v795, %v788
    %v1195 = vpack.c.b16 %v796, %v789
    %v1196 = vpack.c.b16 %v797, %v790
    %v1197 = vpack.c.b16 %v798, %v791
    %v1198 = vpack.c.b16 %v806, %v799
    %v1199 = vpack.c.b16 %v807, %v800
    %v1200 = vpack.c.b16 %v808, %v801
    %v1201 = vpack.c.b16 %v809, %v802
    %v1202 = vpack.c.b16 %v810, %v803
    %v1203 = vpack.c.b16 %v811, %v804
    %v1204 = vpack.c.b16 %v812, %v805
    %v1205 = vpack.c.b16 %v820, %v813
    %v1206 = vpack.c.b16 %v821, %v814
    %v1207 = vpack.c.b16 %v822, %v815
    %v1208 = vpack.c.b16 %v823, %v816
    %v1209 = vpack.c.b16 %v824, %v817
    %v1210 = vpack.c.b16 %v825, %v818
    %v1211 = vpack.c.b16 %v826, %v819
    %v1212 = vpack.c.b16 %v834, %v827
    %v1213 = vpack.c.b16 %v835, %v828
    %v1214 = vpack.c.b16 %v836, %v829
    %v1215 = vpack.c.b16 %v837, %v830
    %v1216 = vpack.c.b16 %v838, %v831
    %v1217 = vpack.c.b16 %v839, %v832
    %v1218 = vpack.c.b16 %v840, %v833
    %v1219 = vpack.c.b16 %v848, %v841
    %v1220 = vpack.c.b16 %v849, %v842
    %v1221 = vpack.c.b16 %v850, %v843
    %v1222 = vpack.c.b16 %v851, %v844
    %v1223 = vpack.c.b16 %v852, %v845
    %v1224 = vpack.c.b16 %v853, %v846
    %v1225 = vpack.c.b16 %v854, %v847
    %v1226 = vpack.c.b16 %v862, %v855
    %v1227 = vpack.c.b16 %v863, %v856
    %v1228 = vpack.c.b16 %v864, %v857
    %v1229 = vpack.c.b16 %v865, %v858
    %v1230 = vpack.c.b16 %v866, %v859
    %v1231 = vpack.c.b16 %v867, %v860
    %v1232 = vpack.c.b16 %v868, %v861
    %v1233 = vpack.c.b16 %v876, %v869
    %v1234 = vpack.c.b16 %v877, %v870
    %v1235 = vpack.c.b16 %v878, %v871
    %v1236 = vpack.c.b16 %v879, %v872
    %v1237 = vpack.c.b16 %v880, %v873
    %v1238 = vpack.c.b16 %v881, %v874
    %v1239 = vpack.c.b16 %v882, %v875
    %v1240 = vpack.c.b16 %v890, %v883
    %v1241 = vpack.c.b16 %v891, %v884
    %v1242 = vpack.c.b16 %v892, %v885
    %v1243 = vpack.c.b16 %v893, %v886
    %v1244 = vpack.c.b16 %v894, %v887
    %v1245 = vpack.c.b16 %v895, %v888
    %v1246 = vpack.c.b16 %v896, %v889
    %v1247 = vpack.c.b16 %v904, %v897
    %v1248 = vpack.c.b16 %v905, %v898
    %v1249 = vpack.c.b16 %v906, %v899
    %v1250 = vpack.c.b16 %v907, %v900
    %v1251 = vpack.c.b16 %v908, %v901
    %v1252 = vpack.c.b16 %v909, %v902
    %v1253 = vpack.c.b16 %v910, %v903
    %v1254 = vpack.c.b16 %v918, %v911
    %v1255 = vpack.c.b16 %v919, %v912
    %v1256 = vpack.c.b16 %v920, %v913
    %v1257 = vpack.c.b16 %v921, %v914
    %v1258 = vpack.c.b16 %v922, %v915
    %v1259 = vpack.c.b16 %v923, %v916
    %v1260 = vpack.c.b16 %v924, %v917
    %v1261 = vpack.c.b16 %v932, %v925
    %v1262 = vpack.c.b16 %v933, %v926
    %v1263 = vpack.c.b16 %v934, %v927
    %v1264 = vpack.c.b16 %v935, %v928
    %v1265 = vpack.c.b16 %v936, %v929
    %v1266 = vpack.c.b16 %v937, %v930
    %v1267 = vpack.c.b16 %v938, %v931
    %v1268 = vpack.c.b16 %v946, %v939
    %v1269 = vpack.c.b16 %v947, %v940
    %v1270 = vpack.c.b16 %v948, %v941
    %v1271 = vpack.c.b16 %v949, %v942
    %v1272 = vpack.c.b16 %v950, %v943
    %v1273 = vpack.c.b16 %v951, %v944
    %v1274 = vpack.c.b16 %v952, %v945
    %v1275 = vpack.c.b16 %v960, %v953
    %v1276 = vpack.c.b16 %v961, %v954
    %v1277 = vpack.c.b16 %v962, %v955
    %v1278 = vpack.c.b16 %v963, %v956
    %v1279 = vpack.c.b16 %v964, %v957
    %v1280 = vpack.c.b16 %v965, %v958
    %v1281 = vpack.c.b16 %v966, %v959
    %v1282 = vpack.c.b16 %v974, %v967
    %v1283 = vpack.c.b16 %v975, %v968
    %v1284 = vpack.c.b16 %v976, %v969
    %v1285 = vpack.c.b16 %v977, %v970
    %v1286 = vpack.c.b16 %v978, %v971
    %v1287 = vpack.c.b16 %v979, %v972
    %v1288 = vpack.c.b16 %v980, %v973
    %v1289 = vpack.c.b16 %v988, %v981
    %v1290 = vpack.c.b16 %v989, %v982
    %v1291 = vpack.c.b16 %v990, %v983
    %v1292 = vpack.c.b16 %v991, %v984
    %v1293 = vpack.c.b16 %v992, %v985
    %v1294 = vpack.c.b16 %v993, %v986
    %v1295 = vpack.c.b16 %v994, %v987
    %v1296 = vpack.c.b16 %v1002, %v995
    %v1297 = vpack.c.b16 %v1003, %v996
    %v1298 = vpack.c.b16 %v1004, %v997
    %v1299 = vpack.c.b16 %v1005, %v998
    %v1300 = vpack.c.b16 %v1006, %v999
    %v1301 = vpack.c.b16 %v1007, %v1000
    %v1302 = vpack.c.b16 %v1008, %v1001
    %v1303 = vpack.c.b16 %v1016, %v1009
    %v1304 = vpack.c.b16 %v1017, %v1010
    %v1305 = vpack.c.b16 %v1018, %v1011
    %v1306 = vpack.c.b16 %v1019, %v1012
    %v1307 = vpack.c.b16 %v1020, %v1013
    %v1308 = vpack.c.b16 %v1021, %v1014
    %v1309 = vpack.c.b16 %v1022, %v1015
    %v1310 = vpack.c.b16 %v1030, %v1023
    %v1311 = vpack.c.b16 %v1031, %v1024
    %v1312 = vpack.c.b16 %v1032, %v1025
    %v1313 = vpack.c.b16 %v1033, %v1026
    %v1314 = vpack.c.b16 %v1034, %v1027
    %v1315 = vpack.c.b16 %v1035, %v1028
    %v1316 = vpack.c.b16 %v1036, %v1029
    %v1317 = vpack.c.b16 %v1044, %v1037
    %v1318 = vpack.c.b16 %v1045, %v1038
    %v1319 = vpack.c.b16 %v1046, %v1039
    %v1320 = vpack.c.b16 %v1047, %v1040
    %v1321 = vpack.c.b16 %v1048, %v1041
    %v1322 = vpack.c.b16 %v1049, %v1042
    %v1323 = vpack.c.b16 %v1050, %v1043
    %v1324 = vpack.c.b16 %v1058, %v1051
    %v1325 = vpack.c.b16 %v1059, %v1052
    %v1326 = vpack.c.b16 %v1060, %v1053
    %v1327 = vpack.c.b16 %v1061, %v1054
    %v1328 = vpack.c.b16 %v1062, %v1055
    %v1329 = vpack.c.b16 %v1063, %v1056
    %v1330 = vpack.c.b16 %v1064, %v1057
    %v1331 = vpack.c.b16 %v1072, %v1065
    %v1332 = vpack.c.b16 %v1073, %v1066
    %v1333 = vpack.c.b16 %v1074, %v1067
    %v1334 = vpack.c.b16 %v1075, %v1068
    %v1335 = vpack.c.b16 %v1076, %v1069
    %v1336 = vpack.c.b16 %v1077, %v1070
    %v1337 = vpack.c.b16 %v1078, %v1071
    %v1338 = vpack.c.b16 %v1086, %v1079
    %v1339 = vpack.c.b16 %v1087, %v1080
    %v1340 = vpack.c.b16 %v1088, %v1081
    %v1341 = vpack.c.b16 %v1089, %v1082
    %v1342 = vpack.c.b16 %v1090, %v1083
    %v1343 = vpack.c.b16 %v1091, %v1084
    %v1344 = vpack.c.b16 %v1092, %v1085
    %v1345 = vpack.c.b16 %v1100, %v1093
    %v1346 = vpack.c.b16 %v1101, %v1094
    %v1347 = vpack.c.b16 %v1102, %v1095
    %v1348 = vpack.c.b16 %v1103, %v1096
    %v1349 = vpack.c.b16 %v1104, %v1097
    %v1350 = vpack.c.b16 %v1105, %v1098
    %v1351 = vpack.c.b16 %v1106, %v1099
    %v1352 = vpack.c.b16 %v1114, %v1107
    %v1353 = vpack.c.b16 %v1115, %v1108
    %v1354 = vpack.c.b16 %v1116, %v1109
    %v1355 = vpack.c.b16 %v1117, %v1110
    %v1356 = vpack.c.b16 %v1118, %v1111
    %v1357 = vpack.c.b16 %v1119, %v1112
    %v1358 = vpack.c.b16 %v1120, %v1113
    %v1359 = vpack.c.b16 %v1128, %v1121
    %v1360 = vpack.c.b16 %v1129, %v1122
    %v1361 = vpack.c.b16 %v1130, %v1123
    %v1362 = vpack.c.b16 %v1131, %v1124
    %v1363 = vpack.c.b16 %v1132, %v1125
    %v1364 = vpack.c.b16 %v1133, %v1126
    %v1365 = vpack.c.b16 %v1134, %v1127
    %v1366 = vpack.c.b16 %v1142, %v1135
    %v1367 = vpack.c.b16 %v1143, %v1136
    %v1368 = vpack.c.b16 %v1144, %v1137
    %v1369 = vpack.c.b16 %v1145, %v1138
    %v1370 = vpack.c.b16 %v1146, %v1139
    %v1371 = vpack.c.b16 %v1147, %v1140
    %v1372 = vpack.c.b16 %v1148, %v1141
    %1597 = vmatprep.subr.bf16.mxu0 %v1150
    %1598 = vmatpush1.bf16.msra.mxu0 %v1149
    %1599 = vmatprep.subr.bf16.mxu0 %v1157
    %1600 = vmatpush1.bf16.msra.mxu0 %v1156
    %1601 = vmatprep.subr.bf16.mxu0 %v1164
    %1602 = vmatpush1.bf16.msra.mxu0 %v1163
    %1603 = vmatprep.subr.bf16.mxu0 %v1171
    %1604 = vmatpush1.bf16.msra.mxu0 %v1170
    %1605 = vmatprep.subr.bf16.mxu0 %v1178
    %1606 = vmatpush1.bf16.msra.mxu0 %v1177
    %1607 = vmatprep.subr.bf16.mxu0 %v1185
    %1608 = vmatpush1.bf16.msra.mxu0 %v1184
    %1609 = vmatprep.subr.bf16.mxu0 %v1192
    %1610 = vmatpush1.bf16.msra.mxu0 %v1191
    %1611 = vmatprep.subr.bf16.mxu0 %v1199
    %1612 = vmatpush1.bf16.msra.mxu0 %v1198
    %1613 = vmatprep.subr.bf16.mxu0 %v1206
    %1614 = vmatpush1.bf16.msra.mxu0 %v1205
    %1615 = vmatprep.subr.bf16.mxu0 %v1213
    %1616 = vmatpush1.bf16.msra.mxu0 %v1212
    %1617 = vmatprep.subr.bf16.mxu0 %v1220
    %1618 = vmatpush1.bf16.msra.mxu0 %v1219
    %1619 = vmatprep.subr.bf16.mxu0 %v1227
    %1620 = vmatpush1.bf16.msra.mxu0 %v1226
    %1621 = vmatprep.subr.bf16.mxu0 %v1234
    %1622 = vmatpush1.bf16.msra.mxu0 %v1233
    %1623 = vmatprep.subr.bf16.mxu0 %v1241
    %1624 = vmatpush1.bf16.msra.mxu0 %v1240
    %1625 = vmatprep.subr.bf16.mxu0 %v1248
    %1626 = vmatpush1.bf16.msra.mxu0 %v1247
    %1627 = vmatprep.subr.bf16.mxu0 %v1255
    %1628 = vmatpush1.bf16.msra.mxu0 %v1254
    %1629 = vmatprep.mubr.bf16.mxu0 %v149
    %1630 = vmatmul.mubr.bf16.gmra.mrb[0].mxu0 %v148
    %v1631 = vpop.f32.mrb[0].mxu0
    %v1632 = vadd.f32 %v413, %v1631
    %v1633 = vpop.f32.mrb[0].mxu0
    %v1634 = vadd.f32 %v417, %v1633
    %v1635 = vpop.f32.mrb[0].mxu0
    %v1636 = vpop.f32.mrb[0].mxu0
    %1637 = vdwg.mxu0
    %1638 = vmatprep.subr.bf16.mxu0 %v1262
    %1639 = vmatpush1.bf16.msra.mxu0 %v1261
    %1640 = vmatprep.subr.bf16.mxu0 %v1269
    %1641 = vmatpush1.bf16.msra.mxu0 %v1268
    %1642 = vmatprep.subr.bf16.mxu0 %v1276
    %1643 = vmatpush1.bf16.msra.mxu0 %v1275
    %1644 = vmatprep.subr.bf16.mxu0 %v1283
    %1645 = vmatpush1.bf16.msra.mxu0 %v1282
    %1646 = vmatprep.subr.bf16.mxu0 %v1290
    %1647 = vmatpush1.bf16.msra.mxu0 %v1289
    %1648 = vmatprep.subr.bf16.mxu0 %v1297
    %1649 = vmatpush1.bf16.msra.mxu0 %v1296
    %1650 = vmatprep.subr.bf16.mxu0 %v1304
    %1651 = vmatpush1.bf16.msra.mxu0 %v1303
    %1652 = vmatprep.subr.bf16.mxu0 %v1311
    %1653 = vmatpush1.bf16.msra.mxu0 %v1310
    %1654 = vmatprep.subr.bf16.mxu0 %v1318
    %1655 = vmatpush1.bf16.msra.mxu0 %v1317
    %1656 = vmatprep.subr.bf16.mxu0 %v1325
    %1657 = vmatpush1.bf16.msra.mxu0 %v1324
    %1658 = vmatprep.subr.bf16.mxu0 %v1332
    %1659 = vmatpush1.bf16.msra.mxu0 %v1331
    %1660 = vmatprep.subr.bf16.mxu0 %v1339
    %1661 = vmatpush1.bf16.msra.mxu0 %v1338
    %1662 = vmatprep.subr.bf16.mxu0 %v1346
    %1663 = vmatpush1.bf16.msra.mxu0 %v1345
    %1664 = vmatprep.subr.bf16.mxu0 %v1353
    %1665 = vmatpush1.bf16.msra.mxu0 %v1352
    %1666 = vmatprep.subr.bf16.mxu0 %v1360
    %1667 = vmatpush1.bf16.msra.mxu0 %v1359
    %1668 = vmatprep.subr.bf16.mxu0 %v1367
    %1669 = vmatpush1.bf16.msra.mxu0 %v1366
    %1670 = vmatprep.mubr.bf16.mxu0 %v151
    %1671 = vmatmul.mubr.bf16.gmra.mrb[0].mxu0 %v150
    %v1672 = vpop.f32.mrb[0].mxu0
    %v1673 = vadd.f32 %v1632, %v1672
    %v1674 = vpop.f32.mrb[0].mxu0
    %v1675 = vadd.f32 %v1634, %v1674
    %v1676 = vpop.f32.mrb[0].mxu0
    %v1677 = vpop.f32.mrb[0].mxu0
    %1678 = vdwg.mxu0
    %1679 = vmatprep.subr.bf16.mxu0 %v1152
    %1680 = vmatpush1.bf16.msra.mxu0 %v1151
    %1681 = vmatprep.subr.bf16.mxu0 %v1159
    %1682 = vmatpush1.bf16.msra.mxu0 %v1158
    %1683 = vmatprep.subr.bf16.mxu0 %v1166
    %1684 = vmatpush1.bf16.msra.mxu0 %v1165
    %1685 = vmatprep.subr.bf16.mxu0 %v1173
    %1686 = vmatpush1.bf16.msra.mxu0 %v1172
    %1687 = vmatprep.subr.bf16.mxu0 %v1180
    %1688 = vmatpush1.bf16.msra.mxu0 %v1179
    %1689 = vmatprep.subr.bf16.mxu0 %v1187
    %1690 = vmatpush1.bf16.msra.mxu0 %v1186
    %1691 = vmatprep.subr.bf16.mxu0 %v1194
    %1692 = vmatpush1.bf16.msra.mxu0 %v1193
    %1693 = vmatprep.subr.bf16.mxu0 %v1201
    %1694 = vmatpush1.bf16.msra.mxu0 %v1200
    %1695 = vmatprep.subr.bf16.mxu0 %v1208
    %1696 = vmatpush1.bf16.msra.mxu0 %v1207
    %1697 = vmatprep.subr.bf16.mxu0 %v1215
    %1698 = vmatpush1.bf16.msra.mxu0 %v1214
    %1699 = vmatprep.subr.bf16.mxu0 %v1222
    %1700 = vmatpush1.bf16.msra.mxu0 %v1221
    %1701 = vmatprep.subr.bf16.mxu0 %v1229
    %1702 = vmatpush1.bf16.msra.mxu0 %v1228
    %1703 = vmatprep.subr.bf16.mxu0 %v1236
    %1704 = vmatpush1.bf16.msra.mxu0 %v1235
    %1705 = vmatprep.subr.bf16.mxu0 %v1243
    %1706 = vmatpush1.bf16.msra.mxu0 %v1242
    %1707 = vmatprep.subr.bf16.mxu0 %v1250
    %1708 = vmatpush1.bf16.msra.mxu0 %v1249
    %1709 = vmatprep.subr.bf16.mxu0 %v1257
    %1710 = vmatpush1.bf16.msra.mxu0 %v1256
    %1711 = vmatprep.mubr.bf16.mxu0 %v149
    %1712 = vmatmul.mubr.bf16.gmra.mrb[0].mxu0 %v148
    %v1713 = vpop.f32.mrb[0].mxu0
    %v1714 = vadd.f32 %v421, %v1713
    %v1715 = vpop.f32.mrb[0].mxu0
    %v1716 = vadd.f32 %v425, %v1715
    %v1717 = vpop.f32.mrb[0].mxu0
    %v1718 = vpop.f32.mrb[0].mxu0
    %1719 = vdwg.mxu0
    %1720 = vmatprep.subr.bf16.mxu0 %v1264
    %1721 = vmatpush1.bf16.msra.mxu0 %v1263
    %1722 = vmatprep.subr.bf16.mxu0 %v1271
    %1723 = vmatpush1.bf16.msra.mxu0 %v1270
    %1724 = vmatprep.subr.bf16.mxu0 %v1278
    %1725 = vmatpush1.bf16.msra.mxu0 %v1277
    %1726 = vmatprep.subr.bf16.mxu0 %v1285
    %1727 = vmatpush1.bf16.msra.mxu0 %v1284
    %1728 = vmatprep.subr.bf16.mxu0 %v1292
    %1729 = vmatpush1.bf16.msra.mxu0 %v1291
    %1730 = vmatprep.subr.bf16.mxu0 %v1299
    %1731 = vmatpush1.bf16.msra.mxu0 %v1298
    %1732 = vmatprep.subr.bf16.mxu0 %v1306
    %1733 = vmatpush1.bf16.msra.mxu0 %v1305
    %1734 = vmatprep.subr.bf16.mxu0 %v1313
    %1735 = vmatpush1.bf16.msra.mxu0 %v1312
    %1736 = vmatprep.subr.bf16.mxu0 %v1320
    %1737 = vmatpush1.bf16.msra.mxu0 %v1319
    %1738 = vmatprep.subr.bf16.mxu0 %v1327
    %1739 = vmatpush1.bf16.msra.mxu0 %v1326
    %1740 = vmatprep.subr.bf16.mxu0 %v1334
    %1741 = vmatpush1.bf16.msra.mxu0 %v1333
    %1742 = vmatprep.subr.bf16.mxu0 %v1341
    %1743 = vmatpush1.bf16.msra.mxu0 %v1340
    %1744 = vmatprep.subr.bf16.mxu0 %v1348
    %1745 = vmatpush1.bf16.msra.mxu0 %v1347
    %1746 = vmatprep.subr.bf16.mxu0 %v1355
    %1747 = vmatpush1.bf16.msra.mxu0 %v1354
    %1748 = vmatprep.subr.bf16.mxu0 %v1362
    %1749 = vmatpush1.bf16.msra.mxu0 %v1361
    %1750 = vmatprep.subr.bf16.mxu0 %v1369
    %1751 = vmatpush1.bf16.msra.mxu0 %v1368
    %1752 = vmatprep.mubr.bf16.mxu0 %v151
    %1753 = vmatmul.mubr.bf16.gmra.mrb[0].mxu0 %v150
    %v1754 = vpop.f32.mrb[0].mxu0
    %v1755 = vadd.f32 %v1714, %v1754
    %v1756 = vpop.f32.mrb[0].mxu0
    %v1757 = vadd.f32 %v1716, %v1756
    %v1758 = vpop.f32.mrb[0].mxu0
    %v1759 = vpop.f32.mrb[0].mxu0
    %1760 = vdwg.mxu0
    %1761 = vmatprep.subr.bf16.mxu0 %v1154
    %1762 = vmatpush1.bf16.msra.mxu0 %v1153
    %1763 = vmatprep.subr.bf16.mxu0 %v1161
    %1764 = vmatpush1.bf16.msra.mxu0 %v1160
    %1765 = vmatprep.subr.bf16.mxu0 %v1168
    %1766 = vmatpush1.bf16.msra.mxu0 %v1167
    %1767 = vmatprep.subr.bf16.mxu0 %v1175
    %1768 = vmatpush1.bf16.msra.mxu0 %v1174
    %1769 = vmatprep.subr.bf16.mxu0 %v1182
    %1770 = vmatpush1.bf16.msra.mxu0 %v1181
    %1771 = vmatprep.subr.bf16.mxu0 %v1189
    %1772 = vmatpush1.bf16.msra.mxu0 %v1188
    %1773 = vmatprep.subr.bf16.mxu0 %v1196
    %1774 = vmatpush1.bf16.msra.mxu0 %v1195
    %1775 = vmatprep.subr.bf16.mxu0 %v1203
    %1776 = vmatpush1.bf16.msra.mxu0 %v1202
    %1777 = vmatprep.subr.bf16.mxu0 %v1210
    %1778 = vmatpush1.bf16.msra.mxu0 %v1209
    %1779 = vmatprep.subr.bf16.mxu0 %v1217
    %1780 = vmatpush1.bf16.msra.mxu0 %v1216
    %1781 = vmatprep.subr.bf16.mxu0 %v1224
    %1782 = vmatpush1.bf16.msra.mxu0 %v1223
    %1783 = vmatprep.subr.bf16.mxu0 %v1231
    %1784 = vmatpush1.bf16.msra.mxu0 %v1230
    %1785 = vmatprep.subr.bf16.mxu0 %v1238
    %1786 = vmatpush1.bf16.msra.mxu0 %v1237
    %1787 = vmatprep.subr.bf16.mxu0 %v1245
    %1788 = vmatpush1.bf16.msra.mxu0 %v1244
    %1789 = vmatprep.subr.bf16.mxu0 %v1252
    %1790 = vmatpush1.bf16.msra.mxu0 %v1251
    %1791 = vmatprep.subr.bf16.mxu0 %v1259
    %1792 = vmatpush1.bf16.msra.mxu0 %v1258
    %1793 = vmatprep.mubr.bf16.mxu0 %v149
    %1794 = vmatmul.mubr.bf16.gmra.mrb[0].mxu0 %v148
    %v1795 = vpop.f32.mrb[0].mxu0
    %v1796 = vadd.f32 %v429, %v1795
    %v1797 = vpop.f32.mrb[0].mxu0
    %v1798 = vadd.f32 %v433, %v1797
    %v1799 = vpop.f32.mrb[0].mxu0
    %v1800 = vpop.f32.mrb[0].mxu0
    %1801 = vdwg.mxu0
    %1802 = vmatprep.subr.bf16.mxu0 %v1266
    %1803 = vmatpush1.bf16.msra.mxu0 %v1265
    %1804 = vmatprep.subr.bf16.mxu0 %v1273
    %1805 = vmatpush1.bf16.msra.mxu0 %v1272
    %1806 = vmatprep.subr.bf16.mxu0 %v1280
    %1807 = vmatpush1.bf16.msra.mxu0 %v1279
    %1808 = vmatprep.subr.bf16.mxu0 %v1287
    %1809 = vmatpush1.bf16.msra.mxu0 %v1286
    %1810 = vmatprep.subr.bf16.mxu0 %v1294
    %1811 = vmatpush1.bf16.msra.mxu0 %v1293
    %1812 = vmatprep.subr.bf16.mxu0 %v1301
    %1813 = vmatpush1.bf16.msra.mxu0 %v1300
    %1814 = vmatprep.subr.bf16.mxu0 %v1308
    %1815 = vmatpush1.bf16.msra.mxu0 %v1307
    %1816 = vmatprep.subr.bf16.mxu0 %v1315
    %1817 = vmatpush1.bf16.msra.mxu0 %v1314
    %1818 = vmatprep.subr.bf16.mxu0 %v1322
    %1819 = vmatpush1.bf16.msra.mxu0 %v1321
    %1820 = vmatprep.subr.bf16.mxu0 %v1329
    %1821 = vmatpush1.bf16.msra.mxu0 %v1328
    %1822 = vmatprep.subr.bf16.mxu0 %v1336
    %1823 = vmatpush1.bf16.msra.mxu0 %v1335
    %1824 = vmatprep.subr.bf16.mxu0 %v1343
    %1825 = vmatpush1.bf16.msra.mxu0 %v1342
    %1826 = vmatprep.subr.bf16.mxu0 %v1350
    %1827 = vmatpush1.bf16.msra.mxu0 %v1349
    %1828 = vmatprep.subr.bf16.mxu0 %v1357
    %1829 = vmatpush1.bf16.msra.mxu0 %v1356
    %1830 = vmatprep.subr.bf16.mxu0 %v1364
    %1831 = vmatpush1.bf16.msra.mxu0 %v1363
    %1832 = vmatprep.subr.bf16.mxu0 %v1371
    %1833 = vmatpush1.bf16.msra.mxu0 %v1370
    %1834 = vmatprep.mubr.bf16.mxu0 %v151
    %1835 = vmatmul.mubr.bf16.gmra.mrb[0].mxu0 %v150
    %v1836 = vpop.f32.mrb[0].mxu0
    %v1837 = vadd.f32 %v1796, %v1836
    %v1838 = vpop.f32.mrb[0].mxu0
    %v1839 = vadd.f32 %v1798, %v1838
    %v1840 = vpop.f32.mrb[0].mxu0
    %v1841 = vpop.f32.mrb[0].mxu0
    %1842 = vdwg.mxu0
    %1843 = vmatprep.subr.bf16.mxu0 0
    %1844 = vmatpush1.bf16.msra.mxu0 %v1155
    %1845 = vmatprep.subr.bf16.mxu0 0
    %1846 = vmatpush1.bf16.msra.mxu0 %v1162
    %1847 = vmatprep.subr.bf16.mxu0 0
    %1848 = vmatpush1.bf16.msra.mxu0 %v1169
    %1849 = vmatprep.subr.bf16.mxu0 0
    %1850 = vmatpush1.bf16.msra.mxu0 %v1176
    %1851 = vmatprep.subr.bf16.mxu0 0
    %1852 = vmatpush1.bf16.msra.mxu0 %v1183
    %1853 = vmatprep.subr.bf16.mxu0 0
    %1854 = vmatpush1.bf16.msra.mxu0 %v1190
    %1855 = vmatprep.subr.bf16.mxu0 0
    %1856 = vmatpush1.bf16.msra.mxu0 %v1197
    %1857 = vmatprep.subr.bf16.mxu0 0
    %1858 = vmatpush1.bf16.msra.mxu0 %v1204
    %1859 = vmatprep.subr.bf16.mxu0 0
    %1860 = vmatpush1.bf16.msra.mxu0 %v1211
    %1861 = vmatprep.subr.bf16.mxu0 0
    %1862 = vmatpush1.bf16.msra.mxu0 %v1218
    %1863 = vmatprep.subr.bf16.mxu0 0
    %1864 = vmatpush1.bf16.msra.mxu0 %v1225
    %1865 = vmatprep.subr.bf16.mxu0 0
    %1866 = vmatpush1.bf16.msra.mxu0 %v1232
    %1867 = vmatprep.subr.bf16.mxu0 0
    %1868 = vmatpush1.bf16.msra.mxu0 %v1239
    %1869 = vmatprep.subr.bf16.mxu0 0
    %1870 = vmatpush1.bf16.msra.mxu0 %v1246
    %1871 = vmatprep.subr.bf16.mxu0 0
    %1872 = vmatpush1.bf16.msra.mxu0 %v1253
    %1873 = vmatprep.subr.bf16.mxu0 0
    %1874 = vmatpush1.bf16.msra.mxu0 %v1260
    %1875 = vmatprep.mubr.bf16.mxu0 %v149
    %1876 = vmatmul.mubr.bf16.gmra.mrb[0].mxu0 %v148
    %v1877 = vpop.f32.mrb[0].mxu0
    %v1878 = vadd.f32 %v437, %v1877
    %v1879 = vpop.f32.mrb[0].mxu0
    %v1880 = vpop.f32.mrb[0].mxu0
    %v1881 = vpop.f32.mrb[0].mxu0
    %1882 = vdwg.mxu0
    %1883 = vmatprep.subr.bf16.mxu0 0
    %1884 = vmatpush1.bf16.msra.mxu0 %v1267
    %1885 = vmatprep.subr.bf16.mxu0 0
    %1886 = vmatpush1.bf16.msra.mxu0 %v1274
    %1887 = vmatprep.subr.bf16.mxu0 0
    %1888 = vmatpush1.bf16.msra.mxu0 %v1281
    %1889 = vmatprep.subr.bf16.mxu0 0
    %1890 = vmatpush1.bf16.msra.mxu0 %v1288
    %1891 = vmatprep.subr.bf16.mxu0 0
    %1892 = vmatpush1.bf16.msra.mxu0 %v1295
    %1893 = vmatprep.subr.bf16.mxu0 0
    %1894 = vmatpush1.bf16.msra.mxu0 %v1302
    %1895 = vmatprep.subr.bf16.mxu0 0
    %1896 = vmatpush1.bf16.msra.mxu0 %v1309
    %1897 = vmatprep.subr.bf16.mxu0 0
    %1898 = vmatpush1.bf16.msra.mxu0 %v1316
    %1899 = vmatprep.subr.bf16.mxu0 0
    %1900 = vmatpush1.bf16.msra.mxu0 %v1323
    %1901 = vmatprep.subr.bf16.mxu0 0
    %1902 = vmatpush1.bf16.msra.mxu0 %v1330
    %1903 = vmatprep.subr.bf16.mxu0 0
    %1904 = vmatpush1.bf16.msra.mxu0 %v1337
    %1905 = vmatprep.subr.bf16.mxu0 0
    %1906 = vmatpush1.bf16.msra.mxu0 %v1344
    %1907 = vmatprep.subr.bf16.mxu0 0
    %1908 = vmatpush1.bf16.msra.mxu0 %v1351
    %1909 = vmatprep.subr.bf16.mxu0 0
    %1910 = vmatpush1.bf16.msra.mxu0 %v1358
    %1911 = vmatprep.subr.bf16.mxu0 0
    %1912 = vmatpush1.bf16.msra.mxu0 %v1365
    %1913 = vmatprep.subr.bf16.mxu0 0
    %1914 = vmatpush1.bf16.msra.mxu0 %v1372
    %1915 = vmatprep.mubr.bf16.mxu0 %v151
    %1916 = vmatmul.mubr.bf16.gmra.mrb[0].mxu0 %v150
    %v1917 = vpop.f32.mrb[0].mxu0
    %v1918 = vadd.f32 %v1878, %v1917
    %v1919 = vpop.f32.mrb[0].mxu0
    %v1920 = vpop.f32.mrb[0].mxu0
    %v1921 = vpop.f32.mrb[0].mxu0
    %1922 = vdwg.mxu0
    %v1923 = vxor.u32 %v1673, 2147483648
    %v1924 = vxor.u32 %v1675, 2147483648
    %v1925 = vxor.u32 %v1755, 2147483648
    %v1926 = vxor.u32 %v1757, 2147483648
    %v1927 = vxor.u32 %v1837, 2147483648
    %v1928 = vxor.u32 %v1839, 2147483648
    %v1929 = vxor.u32 %v1918, 2147483648
    %v1930 = vmul.f32 %v1923, 1.442695
    %v1931 = vpow.pop %v1930
    %v1932 = vmul.f32 %v1924, 1.442695
    %v1933 = vpow.pop %v1932
    %v1934 = vmul.f32 %v1925, 1.442695
    %v1935 = vpow.pop %v1934
    %v1936 = vmul.f32 %v1926, 1.442695
    %v1937 = vpow.pop %v1936
    %v1938 = vmul.f32 %v1927, 1.442695
    %v1939 = vpow.pop %v1938
    %v1940 = vmul.f32 %v1928, 1.442695
    %v1941 = vpow.pop %v1940
    %v1942 = vmul.f32 %v1929, 1.442695
    %v1943 = vpow.pop %v1942
    %v1944 = vadd.f32 %v1931, 1.0
    %v1945 = vadd.f32 %v1933, 1.0
    %v1946 = vadd.f32 %v1935, 1.0
    %v1947 = vadd.f32 %v1937, 1.0
    %v1948 = vadd.f32 %v1939, 1.0
    %v1949 = vadd.f32 %v1941, 1.0
    %v1950 = vadd.f32 %v1943, 1.0
    %v1951 = vrcp.pop %v1944
    %v1952 = vmul.f32 1.0, %v1951
    %v1953 = vrcp.pop %v1945
    %v1954 = vmul.f32 1.0, %v1953
    %v1955 = vrcp.pop %v1946
    %v1956 = vmul.f32 1.0, %v1955
    %v1957 = vrcp.pop %v1947
    %v1958 = vmul.f32 1.0, %v1957
    %v1959 = vrcp.pop %v1948
    %v1960 = vmul.f32 1.0, %v1959
    %v1961 = vrcp.pop %v1949
    %v1962 = vmul.f32 1.0, %v1961
    %v1963 = vrcp.pop %v1950
    %v1964 = vmul.f32 1.0, %v1963
    %1965 = vst [vmem:[#allocation2] sm:$0xff] %v1952
    %1966 = vst [vmem:[#allocation2 + $0x8] sm:$0xff] %v1954
    %1967 = vst [vmem:[#allocation2 + $0x10] sm:$0xff] %v1956
    %1968 = vst [vmem:[#allocation2 + $0x18] sm:$0xff] %v1958
    %1969 = vst [vmem:[#allocation2 + $0x20] sm:$0xff] %v1960
    %1970 = vst [vmem:[#allocation2 + $0x28] sm:$0xff] %v1962
    %vm1971 = vcmask 130048
    %1972 = vst.msk [vmem:[#allocation2 + $0x30] sm:$0xff] %vm1971, %v1964
    // Predicated region
    $region22: #{tpu_custom_call.1} parent=1 // pred_check
      _
    $region23: #{tpu_custom_call.1} parent=1 // pred_check_branch
      %1974 = sbr.rel (0) target = $region25
    $region24: #{tpu_custom_call.1} parent=1 // pred_region
      %s1976 = ssub.s32 896, 896
      %1977 = vsyncadd [#allocation3], %s1976
      %s1979 = sshll.u32 [#allocation2], 4
      %s1980 = int_to_ptr.vmem [resolvable:$true] %s1979
      %1982 = dma.vmem_to_hbm [thread:$0]  %s1980, 896, %s5, [#allocation3]
    $region25: #{tpu_custom_call.1} parent=1 // pred_fallthru
      _
    // Predicated region
    $region26: #{tpu_custom_call.1} parent=1 // pred_check
      _
    $region27: #{tpu_custom_call.1} parent=1 // pred_check_branch
      %1984 = sbr.rel (0) target = $region29
    $region28: #{tpu_custom_call.1} parent=1 // pred_region
      %1985 = dma.done [#allocation3], 896
    $region29: #{tpu_custom_call.1} parent=1 // pred_fallthru
      _
    %1986 = vsyncpa [#allocation3], 1

</llo_original>
